<compile_context>
chip_gen: v5e
topology: v5e:2x2
jax: 0.10.0
libtpu: 0.0.40
codegen_flags: <defaults>
</compile_context>

<pallas_src>
import jax
import jax.numpy as jnp
from jax.experimental import pallas as pl
from jax.experimental.pallas import tpu as pltpu


def _round_up(x, m):
    return ((x + m - 1) // m) * m


def _pad2d(x, rows, cols):
    r, c = x.shape
    return jnp.pad(x, ((0, rows - r), (0, cols - c)))


def gin_kernel(a_ref, x_ref, w1_ref, b1_ref, w2_ref, b2_ref, w3_ref, b3_ref,
               o_ref, acc_ref):
    k = pl.program_id(1)

    @pl.when(k == 0)
    def _():
        acc_ref[...] = jnp.zeros_like(acc_ref)

    # Aggregation partial sum: acc += A[i, k] @ X[k]   (MXU, f32 accumulation)
    acc_ref[...] += jnp.dot(a_ref[...], x_ref[...],
                            preferred_element_type=jnp.float32)

    # Epilogue: 3-layer MLP + ReLU, runs once per row tile on the last k step.
    @pl.when(k == pl.num_programs(1) - 1)
    def _():
        ax = acc_ref[...].astype(w1_ref.dtype)
        h = jnp.dot(ax, w1_ref[...], preferred_element_type=jnp.float32)
        h = jnp.maximum(h + b1_ref[...], 0.0)
        h = jnp.dot(h.astype(w2_ref.dtype), w2_ref[...],
                    preferred_element_type=jnp.float32)
        h = jnp.maximum(h + b2_ref[...], 0.0)
        h = jnp.dot(h.astype(w3_ref.dtype), w3_ref[...],
                    preferred_element_type=jnp.float32)
        h = jnp.maximum(h + b3_ref[...], 0.0)
        o_ref[...] = h.astype(o_ref.dtype)


def gin_forward(A, X, params, *, tm=256, tk=512, compute_dtype=jnp.float32):
    """GIN forward. A: [N, N], X: [N, F_in] -> [N, F_out]."""
    # TODO(synk): Dropout is Identity here (p=0.0 / eval mode); training-mode
    # dropout would need pltpu.prng_* inside the kernel.
    W1, b1, W2, b2, W3, b3 = params
    N, f_in = X.shape
    hidden = W1.shape[1]
    f_out = W3.shape[1]
    out_dtype = X.dtype

    # --- pad to TPU-friendly, tile-divisible sizes ---------------------------
    f_in_p = _round_up(f_in, 128)
    h_p = _round_up(hidden, 128)
    f_out_p = _round_up(f_out, 128)
    tm = min(tm, _round_up(N, 32))        # row tile (sublane dim, packing-safe)
    tk = min(tk, _round_up(N, 128))       # aggregation-K tile (lane dim)
    n_m = _round_up(N, tm)
    n_k = _round_up(N, tk)

    a_p = _pad2d(A, n_m, n_k).astype(compute_dtype)
    x_p = _pad2d(X, n_k, f_in_p).astype(compute_dtype)
    w1_p = _pad2d(W1, f_in_p, h_p).astype(compute_dtype)
    w2_p = _pad2d(W2, h_p, h_p).astype(compute_dtype)
    w3_p = _pad2d(W3, h_p, f_out_p).astype(compute_dtype)
    b1_p = _pad2d(b1, 1, h_p).astype(jnp.float32)
    b2_p = _pad2d(b2, 1, h_p).astype(jnp.float32)
    b3_p = _pad2d(b3, 1, f_out_p).astype(jnp.float32)

    grid = (n_m // tm, n_k // tk)

    # VMEM budget (double-buffered streams + resident weights + accumulator).
    itm = jnp.dtype(compute_dtype).itemsize
    oitm = jnp.dtype(out_dtype).itemsize
    w_bytes = (f_in_p * h_p + h_p * h_p + h_p * f_out_p) * itm
    b_bytes = (2 * h_p + f_out_p) * 4
    tile_bytes = (2 * (tm * tk + tk * f_in_p) * itm     # A, X double-buffered
                  + 2 * w_bytes + 2 * b_bytes           # resident weights/bias
                  + 2 * tm * f_out_p * oitm             # output double buffer
                  + tm * f_in_p * 4)                    # f32 accumulator
    vmem_limit = int(min(2 * tile_bytes + (8 << 20), 64 << 20))

    flops = (2 * n_m * n_k * f_in_p
             + 2 * n_m * (f_in_p * h_p + h_p * h_p + h_p * f_out_p))
    bytes_accessed = (itm * (n_m * n_k + n_k * f_in_p) + w_bytes + b_bytes
                      + oitm * n_m * f_out_p)

    out = pl.pallas_call(
        gin_kernel,
        out_shape=jax.ShapeDtypeStruct((n_m, f_out_p), out_dtype),
        grid_spec=pltpu.PrefetchScalarGridSpec(
            num_scalar_prefetch=0,
            grid=grid,
            in_specs=[
                pl.BlockSpec((tm, tk), lambda i, k: (i, k)),        # A
                pl.BlockSpec((tk, f_in_p), lambda i, k: (k, 0)),    # X
                pl.BlockSpec((f_in_p, h_p), lambda i, k: (0, 0)),   # W1
                pl.BlockSpec((1, h_p), lambda i, k: (0, 0)),        # b1
                pl.BlockSpec((h_p, h_p), lambda i, k: (0, 0)),      # W2
                pl.BlockSpec((1, h_p), lambda i, k: (0, 0)),        # b2
                pl.BlockSpec((h_p, f_out_p), lambda i, k: (0, 0)),  # W3
                pl.BlockSpec((1, f_out_p), lambda i, k: (0, 0)),    # b3
            ],
            out_specs=pl.BlockSpec((tm, f_out_p), lambda i, k: (i, 0)),
            scratch_shapes=[pltpu.VMEM((tm, f_in_p), jnp.float32)],
        ),
        compiler_params=pltpu.CompilerParams(
            dimension_semantics=("parallel", "arbitrary"),
            vmem_limit_bytes=vmem_limit,
        ),
        cost_estimate=pl.CostEstimate(
            flops=int(flops), transcendentals=0,
            bytes_accessed=int(bytes_accessed)),
    )(a_p, x_p, w1_p, b1_p, w2_p, b2_p, w3_p, b3_p)

    return out[:N, :f_out]


def init_params(key, input_dim, hidden_dim, output_dim):
    """PyTorch-Linear-style init: U(-1/sqrt(fan_in), 1/sqrt(fan_in)).
    Weights stored transposed as [in_dim, out_dim]; biases as [1, dim]."""
    def linear(k, fan_in, fan_out):
        kw, kb = jax.random.split(k)
        bound = 1.0 / jnp.sqrt(fan_in)
        W = jax.random.uniform(kw, (fan_in, fan_out), jnp.float32, -bound, bound)
        b = jax.random.uniform(kb, (1, fan_out), jnp.float32, -bound, bound)
        return W, b

    k1, k2, k3 = jax.random.split(key, 3)
    W1, b1 = linear(k1, input_dim, hidden_dim)
    W2, b2 = linear(k2, hidden_dim, hidden_dim)
    W3, b3 = linear(k3, hidden_dim, output_dim)
    return (W1, b1, W2, b2, W3, b3)


def reference_forward(A, X, params):
    W1, b1, W2, b2, W3, b3 = params
    hp = jax.lax.Precision.HIGHEST
    h = jnp.dot(A, X, precision=hp)
    h = jnp.maximum(jnp.dot(h, W1, precision=hp) + b1, 0.0)
    h = jnp.maximum(jnp.dot(h, W2, precision=hp) + b2, 0.0)
    h = jnp.maximum(jnp.dot(h, W3, precision=hp) + b3, 0.0)
    return h


if __name__ == "__main__":
    # Small but non-trivial: exercises the row grid (3 tiles), K accumulation
    # (2 steps) and the ragged-edge padding path (N, dims not 128-aligned).
    N = 520
    input_dim = 64
    hidden_dim = 96
    output_dim = 48
    p = 0.0           # dropout prob -> Identity

    key = jax.random.PRNGKey(0)
    ka, kx, kp = jax.random.split(key, 3)

    A = jax.random.uniform(ka, (N, N), jnp.float32)          # dense adjacency
    X = jax.random.normal(kx, (N, input_dim), jnp.float32)   # node features
    params = init_params(kp, input_dim, hidden_dim, output_dim)

    # f32 compute path.
    out = jax.block_until_ready(gin_forward(A, X, params))
    ref = reference_forward(A, X, params)
    assert out.shape == (N, output_dim)
    assert jnp.allclose(out, ref, atol=2e-3, rtol=2e-3), \
        float(jnp.max(jnp.abs(out - ref)))

    # bf16 compute path (v6e/v7x recommendation: halves HBM traffic on A@X).
    out_bf16 = jax.block_until_ready(
        gin_forward(A, X, params, compute_dtype=jnp.bfloat16))
    W1, b1, W2, b2, W3, b3 = params
    rt = lambda a: a.astype(jnp.bfloat16).astype(jnp.float32)   # bf16 rounding
    ref_bf16 = reference_forward(rt(A), rt(X),
                                 (rt(W1), b1, rt(W2), b2, rt(W3), b3))
    assert out_bf16.shape == (N, output_dim)
    assert jnp.allclose(out_bf16, ref_bf16, atol=0.5, rtol=5e-2), \
        float(jnp.max(jnp.abs(out_bf16 - ref_bf16)))

    print("KERNEL_OK")
</pallas_src>

<mosaic_0001>
module attributes {stable_mosaic.version = 11 : i64} {
  func.func @gin_kernel(%arg0: i32, %arg1: i32, %arg2: memref<256x512xf32, #tpu.memory_space<vmem>>, %arg3: memref<512x128xf32, #tpu.memory_space<vmem>>, %arg4: memref<128x128xf32, #tpu.memory_space<vmem>>, %arg5: memref<1x128xf32, #tpu.memory_space<vmem>>, %arg6: memref<128x128xf32, #tpu.memory_space<vmem>>, %arg7: memref<1x128xf32, #tpu.memory_space<vmem>>, %arg8: memref<128x128xf32, #tpu.memory_space<vmem>>, %arg9: memref<1x128xf32, #tpu.memory_space<vmem>>, %arg10: memref<256x128xf32, #tpu.memory_space<vmem>>, %arg11: memref<256x128xf32, #tpu.memory_space<vmem>>) attributes {dimension_semantics = [#tpu.dimension_semantics<parallel>, #tpu.dimension_semantics<arbitrary>], iteration_bounds = array<i64: 3, 2>, scalar_prefetch = 0 : i64, scratch_operands = 1 : i64, tpu.core_type = #tpu.core_type<tc>, window_params = [{transform_indices = @transform_0, window_bounds = array<i64: 256, 512>}, {transform_indices = @transform_1, window_bounds = array<i64: 512, 128>}, {pipeline_mode = #tpu.pipeline_mode<synchronous>, transform_indices = @transform_2, window_bounds = array<i64: 128, 128>}, {pipeline_mode = #tpu.pipeline_mode<synchronous>, transform_indices = @transform_3, window_bounds = array<i64: 1, 128>}, {pipeline_mode = #tpu.pipeline_mode<synchronous>, transform_indices = @transform_4, window_bounds = array<i64: 128, 128>}, {pipeline_mode = #tpu.pipeline_mode<synchronous>, transform_indices = @transform_5, window_bounds = array<i64: 1, 128>}, {pipeline_mode = #tpu.pipeline_mode<synchronous>, transform_indices = @transform_6, window_bounds = array<i64: 128, 128>}, {pipeline_mode = #tpu.pipeline_mode<synchronous>, transform_indices = @transform_7, window_bounds = array<i64: 1, 128>}, {transform_indices = @transform_8, window_bounds = array<i64: 256, 128>}]} {
    %c0_i32 = arith.constant 0 : i32
    %0 = arith.cmpi eq, %arg1, %c0_i32 : i32
    %1 = arith.extui %0 : i1 to i32
    %c0_i32_0 = arith.constant 0 : i32
    %2 = arith.cmpi ne, %1, %c0_i32_0 : i32
    scf.if %2 {
      %cst_9 = arith.constant 0.000000e+00 : f32
      %12 = vector.broadcast %cst_9 : f32 to vector<256x128xf32>
      %c0_10 = arith.constant 0 : index
      %c0_11 = arith.constant 0 : index
      %13 = vector.load %arg11[%c0_10, %c0_11] : memref<256x128xf32, #tpu.memory_space<vmem>>, vector<256x128xf32>
      tpu.vector_store %arg11[%c0_10, %c0_11], %12 {strides = array<i32>} : memref<256x128xf32, #tpu.memory_space<vmem>>, vector<256x128xf32>,
    } else {
    }
    %c0 = arith.constant 0 : index
    %c0_1 = arith.constant 0 : index
    %3 = vector.load %arg11[%c0, %c0_1] : memref<256x128xf32, #tpu.memory_space<vmem>>, vector<256x128xf32>
    %c0_2 = arith.constant 0 : index
    %c0_3 = arith.constant 0 : index
    %4 = vector.load %arg2[%c0_2, %c0_3] : memref<256x512xf32, #tpu.memory_space<vmem>>, vector<256x512xf32>
    %c0_4 = arith.constant 0 : index
    %c0_5 = arith.constant 0 : index
    %5 = vector.load %arg3[%c0_4, %c0_5] : memref<512x128xf32, #tpu.memory_space<vmem>>, vector<512x128xf32>
    %cst = arith.constant dense<0.000000e+00> : vector<256x128xf32>
    %6 = tpu.matmul %4, %5, %cst {dimension_numbers = #tpu.dot_dimension_numbers<[1], [0], [0], [1], [0, 0, 1, 1], [], []>} : vector<256x512xf32>, vector<512x128xf32>, vector<256x128xf32> -> vector<256x128xf32>
    %7 = arith.addf %3, %6 : vector<256x128xf32>
    %c0_6 = arith.constant 0 : index
    %c0_7 = arith.constant 0 : index
    %8 = vector.load %arg11[%c0_6, %c0_7] : memref<256x128xf32, #tpu.memory_space<vmem>>, vector<256x128xf32>
    tpu.vector_store %arg11[%c0_6, %c0_7], %7 {strides = array<i32>} : memref<256x128xf32, #tpu.memory_space<vmem>>, vector<256x128xf32>,
    %c1_i32 = arith.constant 1 : i32
    %9 = arith.cmpi eq, %arg1, %c1_i32 : i32
    %10 = arith.extui %9 : i1 to i32
    %c0_i32_8 = arith.constant 0 : i32
    %11 = arith.cmpi ne, %10, %c0_i32_8 : i32
    scf.if %11 {
      %c0_9 = arith.constant 0 : index
      %c0_10 = arith.constant 0 : index
      %12 = vector.load %arg11[%c0_9, %c0_10] : memref<256x128xf32, #tpu.memory_space<vmem>>, vector<256x128xf32>
      %c0_11 = arith.constant 0 : index
      %c0_12 = arith.constant 0 : index
      %13 = vector.load %arg4[%c0_11, %c0_12] : memref<128x128xf32, #tpu.memory_space<vmem>>, vector<128x128xf32>
      %cst_13 = arith.constant dense<0.000000e+00> : vector<256x128xf32>
      %14 = tpu.matmul %12, %13, %cst_13 {dimension_numbers = #tpu.dot_dimension_numbers<[1], [0], [0], [1], [0, 0, 1, 1], [], []>} : vector<256x128xf32>, vector<128x128xf32>, vector<256x128xf32> -> vector<256x128xf32>
      %c0_14 = arith.constant 0 : index
      %c0_15 = arith.constant 0 : index
      %15 = vector.load %arg5[%c0_14, %c0_15] : memref<1x128xf32, #tpu.memory_space<vmem>>, vector<1x128xf32>
      %16 = vector.broadcast %15 : vector<1x128xf32> to vector<256x128xf32>
      %17 = arith.addf %14, %16 : vector<256x128xf32>
      %cst_16 = arith.constant 0.000000e+00 : f32
      %18 = vector.broadcast %cst_16 : f32 to vector<256x128xf32>
      %19 = arith.maximumf %17, %18 : vector<256x128xf32>
      %c0_17 = arith.constant 0 : index
      %c0_18 = arith.constant 0 : index
      %20 = vector.load %arg6[%c0_17, %c0_18] : memref<128x128xf32, #tpu.memory_space<vmem>>, vector<128x128xf32>
      %cst_19 = arith.constant dense<0.000000e+00> : vector<256x128xf32>
      %21 = tpu.matmul %19, %20, %cst_19 {dimension_numbers = #tpu.dot_dimension_numbers<[1], [0], [0], [1], [0, 0, 1, 1], [], []>} : vector<256x128xf32>, vector<128x128xf32>, vector<256x128xf32> -> vector<256x128xf32>
      %c0_20 = arith.constant 0 : index
      %c0_21 = arith.constant 0 : index
      %22 = vector.load %arg7[%c0_20, %c0_21] : memref<1x128xf32, #tpu.memory_space<vmem>>, vector<1x128xf32>
      %23 = vector.broadcast %22 : vector<1x128xf32> to vector<256x128xf32>
      %24 = arith.addf %21, %23 : vector<256x128xf32>
      %cst_22 = arith.constant 0.000000e+00 : f32
      %25 = vector.broadcast %cst_22 : f32 to vector<256x128xf32>
      %26 = arith.maximumf %24, %25 : vector<256x128xf32>
      %c0_23 = arith.constant 0 : index
      %c0_24 = arith.constant 0 : index
      %27 = vector.load %arg8[%c0_23, %c0_24] : memref<128x128xf32, #tpu.memory_space<vmem>>, vector<128x128xf32>
      %cst_25 = arith.constant dense<0.000000e+00> : vector<256x128xf32>
      %28 = tpu.matmul %26, %27, %cst_25 {dimension_numbers = #tpu.dot_dimension_numbers<[1], [0], [0], [1], [0, 0, 1, 1], [], []>} : vector<256x128xf32>, vector<128x128xf32>, vector<256x128xf32> -> vector<256x128xf32>
      %c0_26 = arith.constant 0 : index
      %c0_27 = arith.constant 0 : index
      %29 = vector.load %arg9[%c0_26, %c0_27] : memref<1x128xf32, #tpu.memory_space<vmem>>, vector<1x128xf32>
      %30 = vector.broadcast %29 : vector<1x128xf32> to vector<256x128xf32>
      %31 = arith.addf %28, %30 : vector<256x128xf32>
      %cst_28 = arith.constant 0.000000e+00 : f32
      %32 = vector.broadcast %cst_28 : f32 to vector<256x128xf32>
      %33 = arith.maximumf %31, %32 : vector<256x128xf32>
      %c0_29 = arith.constant 0 : index
      %c0_30 = arith.constant 0 : index
      %34 = vector.load %arg10[%c0_29, %c0_30] : memref<256x128xf32, #tpu.memory_space<vmem>>, vector<256x128xf32>
      tpu.vector_store %arg10[%c0_29, %c0_30], %33 {strides = array<i32>} : memref<256x128xf32, #tpu.memory_space<vmem>>, vector<256x128xf32>,
    } else {
    }
    return
  }
  func.func @transform_0(%arg0: i32, %arg1: i32) -> (i32, i32) {
    %c0_i32 = arith.constant 0 : i32
    return %arg0, %arg1 : i32, i32
  }
  func.func @transform_1(%arg0: i32, %arg1: i32) -> (i32, i32) {
    %c0_i32 = arith.constant 0 : i32
    %c0_i32_0 = arith.constant 0 : i32
    return %arg1, %c0_i32 : i32, i32
  }
  func.func @transform_2(%arg0: i32, %arg1: i32) -> (i32, i32) {
    %c0_i32 = arith.constant 0 : i32
    %c0_i32_0 = arith.constant 0 : i32
    %c0_i32_1 = arith.constant 0 : i32
    return %c0_i32, %c0_i32_0 : i32, i32
  }
  func.func @transform_3(%arg0: i32, %arg1: i32) -> (i32, i32) {
    %c0_i32 = arith.constant 0 : i32
    %c0_i32_0 = arith.constant 0 : i32
    %c0_i32_1 = arith.constant 0 : i32
    return %c0_i32, %c0_i32_0 : i32, i32
  }
  func.func @transform_4(%arg0: i32, %arg1: i32) -> (i32, i32) {
    %c0_i32 = arith.constant 0 : i32
    %c0_i32_0 = arith.constant 0 : i32
    %c0_i32_1 = arith.constant 0 : i32
    return %c0_i32, %c0_i32_0 : i32, i32
  }
  func.func @transform_5(%arg0: i32, %arg1: i32) -> (i32, i32) {
    %c0_i32 = arith.constant 0 : i32
    %c0_i32_0 = arith.constant 0 : i32
    %c0_i32_1 = arith.constant 0 : i32
    return %c0_i32, %c0_i32_0 : i32, i32
  }
  func.func @transform_6(%arg0: i32, %arg1: i32) -> (i32, i32) {
    %c0_i32 = arith.constant 0 : i32
    %c0_i32_0 = arith.constant 0 : i32
    %c0_i32_1 = arith.constant 0 : i32
    return %c0_i32, %c0_i32_0 : i32, i32
  }
  func.func @transform_7(%arg0: i32, %arg1: i32) -> (i32, i32) {
    %c0_i32 = arith.constant 0 : i32
    %c0_i32_0 = arith.constant 0 : i32
    %c0_i32_1 = arith.constant 0 : i32
    return %c0_i32, %c0_i32_0 : i32, i32
  }
  func.func @transform_8(%arg0: i32, %arg1: i32) -> (i32, i32) {
    %c0_i32 = arith.constant 0 : i32
    %c0_i32_0 = arith.constant 0 : i32
    return %arg0, %c0_i32 : i32, i32
  }
}

</mosaic_0001>

<llo_original>
// kernel: tpu_custom_call.1
$region0: #{tpu_custom_call.1}
  #allocation0 [shape = 'u32[]', space=smem, size = 0x4, offset = 0x4, fixed_abs, tag = 'smem constant byte address 0x4 - core index']
  #allocation1 [shape = 'u32[72,128]{1,0:T(1,128)}', space=vmem, size = 0x9000, scoped, tag = 'internal scratch']
  #allocation2 [shape = 'f32[256,128]{1,0:T(8,128)}', space=vmem, size = 0x20000, scoped, tag = 'scratch operand']
  %s0 = inlined_call_operand.hbm [shape: f32[768,1024], index: 0, kind: input, shape index: {}]
  %s1 = inlined_call_operand.hbm [shape: f32[1024,128], index: 1, kind: input, shape index: {}]
  %s2 = inlined_call_operand.hbm [shape: f32[128,128], index: 2, kind: input, shape index: {}]
  %s3 = inlined_call_operand.hbm [shape: f32[1,128], index: 3, kind: input, shape index: {}]
  %s4 = inlined_call_operand.hbm [shape: f32[128,128], index: 4, kind: input, shape index: {}]
  %s5 = inlined_call_operand.hbm [shape: f32[1,128], index: 5, kind: input, shape index: {}]
  %s6 = inlined_call_operand.hbm [shape: f32[128,128], index: 6, kind: input, shape index: {}]
  %s7 = inlined_call_operand.hbm [shape: f32[1,128], index: 7, kind: input, shape index: {}]
  %s8 = inlined_call_operand.hbm [shape: f32[768,128], index: 8, kind: output, shape index: {}]
  %s9 = sld [smem:[#allocation0]]
  $region105: #{tpu_custom_call.1} parent=0
    _
  %s11 = ssub.s32 1, %s9
  %s12 = scalar_select 0, %s11, %s9
  $region1: #{tpu_custom_call.1} parent=0
    #allocation3 [shape = 'u8[1048576]{0}', space=vmem, size = 0x100000, scoped, tag = 'input window, operand 0']
    #allocation4 [shape = 's32[2]{0}', space=sflag, size = 0x8, scoped, tag = 'scoped memory for tpu_custom_call.1']
    #allocation5 [shape = 's32[2]{0}', space=sflag, size = 0x8, scoped, tag = 'scoped memory for tpu_custom_call.1']
    #allocation6 [shape = 'u8[524288]{0}', space=vmem, size = 0x80000, scoped, tag = 'input window, operand 1']
    #allocation7 [shape = 's32[2]{0}', space=sflag, size = 0x8, scoped, tag = 'scoped memory for tpu_custom_call.1']
    #allocation8 [shape = 'u8[65536]{0}', space=vmem, size = 0x10000, scoped, tag = 'input window, operand 2, single buffered']
    #allocation9 [shape = 'u8[512]{0}', space=vmem, size = 0x400, scoped, tag = 'input window, operand 3, single buffered']
    #allocation10 [shape = 's32[1]{0}', space=sflag, size = 0x4, scoped, tag = 'scoped memory for tpu_custom_call.1']
    #allocation11 [shape = 'u8[65536]{0}', space=vmem, size = 0x10000, scoped, tag = 'input window, operand 4, single buffered']
    #allocation12 [shape = 'u8[512]{0}', space=vmem, size = 0x400, scoped, tag = 'input window, operand 5, single buffered']
    #allocation13 [shape = 's32[1]{0}', space=sflag, size = 0x4, scoped, tag = 'scoped memory for tpu_custom_call.1']
    #allocation14 [shape = 'u8[65536]{0}', space=vmem, size = 0x10000, scoped, tag = 'input window, operand 6, single buffered']
    #allocation15 [shape = 'u8[512]{0}', space=vmem, size = 0x400, scoped, tag = 'input window, operand 7, single buffered']
    #allocation16 [shape = 's32[1]{0}', space=sflag, size = 0x4, scoped, tag = 'scoped memory for tpu_custom_call.1']
    #allocation17 [shape = 'u8[262144]{0}', space=vmem, size = 0x40000, scoped, tag = 'output window, operand 0']
    %13 = vsyncpa [#allocation4], 0
    %s14 = scalar_lea.sflag [#allocation4], 1
    %15 = vsyncpa %s14, 0
    %16 = vsyncpa [#allocation7], 0
    %s17 = scalar_lea.sflag [#allocation7], 1
    %18 = vsyncpa %s17, 0
    %19 = vsyncpa [#allocation10], 0
    %20 = vsyncpa [#allocation13], 0
    %21 = vsyncpa [#allocation16], 0
    %22 = vsyncpa [#allocation5], 0
    %s23 = scalar_lea.sflag [#allocation5], 1
    %24 = vsyncpa %s23, 0
    loop: start=0, step=1, limit=8
    $region2: #{tpu_custom_call.1} parent=1 // loop_pre_header
      _
    $region3: #{tpu_custom_call.1} parent=1 // loop_header
      %s26 = sphi 0, %s30
      %p27 = scmp.ge.s32.totalorder %s26, 8
      %s33 = sphi 0, %s45
      %s34 = sphi 0, %s41
      %s35 = sphi 0, %s33
      %s36 = sphi 0, %s34
      %s37 = sphi 0, %s35
      %s38 = sphi 0, %s36
      %s50 = sphi 0, %s52
      %s53 = sphi 0, %s50
      %s54 = sphi 0, %s53
      %s70 = sphi 0, %s54
      %s76 = sphi 0, %s78
      %s79 = sphi 0, %s76
      %s80 = sphi 0, %s79
      %s96 = sphi 0, %s80
      %s100 = sphi 0, %s100
      %s102 = sphi 0, %s100
      %s103 = sphi 0, %s102
      %s117 = sphi 0, %s103
      %s121 = sphi 0, %s121
      %s123 = sphi 0, %s121
      %s124 = sphi 0, %s123
      %s138 = sphi 0, %s124
      %s142 = sphi 0, %s142
      %s144 = sphi 0, %s142
      %s145 = sphi 0, %s144
      %s159 = sphi 0, %s145
      %s163 = sphi 0, %s163
      %s165 = sphi 0, %s163
      %s166 = sphi 0, %s165
      %s180 = sphi 0, %s166
      %s184 = sphi 0, %s184
      %s186 = sphi 0, %s184
      %s187 = sphi 0, %s186
      %s201 = sphi 0, %s187
      %s205 = sphi 0, %s205
      %s207 = sphi 0, %s205
      %s208 = sphi 0, %s207
      %s222 = sphi 0, %s208
      %s228 = sphi 0, %s230
      %s231 = sphi 0, %s228
      %s232 = sphi 0, %s231
      %s248 = sphi 0, %s232
    $region4: #{tpu_custom_call.1} parent=1 // loop_header_branch
      %29 = sbr.rel (%p27) target = $region8
    $region5: #{tpu_custom_call.1} parent=1 // loop_body
      %s31 = ssub.s32 %s26, 1
      %s32 = ssub.s32 %s26, 2
      %s39 = sadd.s32 1, %s34
      %p40 = scmp.ge.s32.totalorder %s39, 2
      %s41 = scalar_select %p40, 0, %s39
      %s42 = sadd.s32 1, %s33
      %s43 = scalar_select %p40, %s42, %s33
      %p44 = scmp.ge.s32.totalorder %s43, 3
      %s45 = scalar_select %p44, 0, %s43
      %s46 = ssub.s32 %s33, %s45
      %s47 = ssub.s32 %s34, %s41
      %s48 = sor.u32 %s46, %s47
      %p49 = scmp.eq.s32.totalorder %s48, 0
      %s51 = sadd.s32 %s50, 1
      %s52 = scalar_select %p49, %s50, %s51
      %p55 = pneg %p49
      %p56 = scmp.eq.s32.totalorder %s26, 5
      %p57 = por %p55, %p56
      %p58 = scmp.ne.s32.totalorder %s50, %s53
      %p59 = scmp.eq.s32.totalorder %s26, 0
      %p60 = por %p58, %p59
      %p61 = scmp.ne.s32.totalorder %s50, %s53
      %p62 = scmp.eq.s32.totalorder %s31, 5
      %p63 = por %p61, %p62
      %p64 = scmp.ne.s32.totalorder %s53, %s54
      %p65 = scmp.eq.s32.totalorder %s31, 0
      %p66 = por %p64, %p65
      %p67 = scmp.ne.s32.totalorder %s53, %s54
      %p68 = scmp.eq.s32.totalorder %s32, 5
      %p69 = por %p67, %p68
      %p71 = scmp.ne.s32.totalorder %s54, %s70
      %p72 = scmp.eq.s32.totalorder %s32, 0
      %p73 = por %p71, %p72
      %s74 = ssub.s32 %s34, %s41
      %p75 = scmp.eq.s32.totalorder %s74, 0
      %s77 = sadd.s32 %s76, 1
      %s78 = scalar_select %p75, %s76, %s77
      %p81 = pneg %p75
      %p82 = scmp.eq.s32.totalorder %s26, 5
      %p83 = por %p81, %p82
      %p84 = scmp.ne.s32.totalorder %s76, %s79
      %p85 = scmp.eq.s32.totalorder %s26, 0
      %p86 = por %p84, %p85
      %p87 = scmp.ne.s32.totalorder %s76, %s79
      %p88 = scmp.eq.s32.totalorder %s31, 5
      %p89 = por %p87, %p88
      %p90 = scmp.ne.s32.totalorder %s79, %s80
      %p91 = scmp.eq.s32.totalorder %s31, 0
      %p92 = por %p90, %p91
      %p93 = scmp.ne.s32.totalorder %s79, %s80
      %p94 = scmp.eq.s32.totalorder %s32, 5
      %p95 = por %p93, %p94
      %p97 = scmp.ne.s32.totalorder %s80, %s96
      %p98 = scmp.eq.s32.totalorder %s32, 0
      %p99 = por %p97, %p98
      %s101 = sadd.s32 %s100, 1
      %p104 = scmp.eq.s32.totalorder %s26, 5
      %p105 = scmp.ne.s32.totalorder %s100, %s102
      %p106 = scmp.eq.s32.totalorder %s26, 0
      %p107 = por %p105, %p106
      %p108 = scmp.ne.s32.totalorder %s100, %s102
      %p109 = scmp.eq.s32.totalorder %s31, 5
      %p110 = por %p108, %p109
      %p111 = scmp.ne.s32.totalorder %s102, %s103
      %p112 = scmp.eq.s32.totalorder %s31, 0
      %p113 = por %p111, %p112
      %p114 = scmp.ne.s32.totalorder %s102, %s103
      %p115 = scmp.eq.s32.totalorder %s32, 5
      %p116 = por %p114, %p115
      %p118 = scmp.ne.s32.totalorder %s103, %s117
      %p119 = scmp.eq.s32.totalorder %s32, 0
      %p120 = por %p118, %p119
      %s122 = sadd.s32 %s121, 1
      %p125 = scmp.eq.s32.totalorder %s26, 5
      %p126 = scmp.ne.s32.totalorder %s121, %s123
      %p127 = scmp.eq.s32.totalorder %s26, 0
      %p128 = por %p126, %p127
      %p129 = scmp.ne.s32.totalorder %s121, %s123
      %p130 = scmp.eq.s32.totalorder %s31, 5
      %p131 = por %p129, %p130
      %p132 = scmp.ne.s32.totalorder %s123, %s124
      %p133 = scmp.eq.s32.totalorder %s31, 0
      %p134 = por %p132, %p133
      %p135 = scmp.ne.s32.totalorder %s123, %s124
      %p136 = scmp.eq.s32.totalorder %s32, 5
      %p137 = por %p135, %p136
      %p139 = scmp.ne.s32.totalorder %s124, %s138
      %p140 = scmp.eq.s32.totalorder %s32, 0
      %p141 = por %p139, %p140
      %s143 = sadd.s32 %s142, 1
      %p146 = scmp.eq.s32.totalorder %s26, 5
      %p147 = scmp.ne.s32.totalorder %s142, %s144
      %p148 = scmp.eq.s32.totalorder %s26, 0
      %p149 = por %p147, %p148
      %p150 = scmp.ne.s32.totalorder %s142, %s144
      %p151 = scmp.eq.s32.totalorder %s31, 5
      %p152 = por %p150, %p151
      %p153 = scmp.ne.s32.totalorder %s144, %s145
      %p154 = scmp.eq.s32.totalorder %s31, 0
      %p155 = por %p153, %p154
      %p156 = scmp.ne.s32.totalorder %s144, %s145
      %p157 = scmp.eq.s32.totalorder %s32, 5
      %p158 = por %p156, %p157
      %p160 = scmp.ne.s32.totalorder %s145, %s159
      %p161 = scmp.eq.s32.totalorder %s32, 0
      %p162 = por %p160, %p161
      %s164 = sadd.s32 %s163, 1
      %p167 = scmp.eq.s32.totalorder %s26, 5
      %p168 = scmp.ne.s32.totalorder %s163, %s165
      %p169 = scmp.eq.s32.totalorder %s26, 0
      %p170 = por %p168, %p169
      %p171 = scmp.ne.s32.totalorder %s163, %s165
      %p172 = scmp.eq.s32.totalorder %s31, 5
      %p173 = por %p171, %p172
      %p174 = scmp.ne.s32.totalorder %s165, %s166
      %p175 = scmp.eq.s32.totalorder %s31, 0
      %p176 = por %p174, %p175
      %p177 = scmp.ne.s32.totalorder %s165, %s166
      %p178 = scmp.eq.s32.totalorder %s32, 5
      %p179 = por %p177, %p178
      %p181 = scmp.ne.s32.totalorder %s166, %s180
      %p182 = scmp.eq.s32.totalorder %s32, 0
      %p183 = por %p181, %p182
      %s185 = sadd.s32 %s184, 1
      %p188 = scmp.eq.s32.totalorder %s26, 5
      %p189 = scmp.ne.s32.totalorder %s184, %s186
      %p190 = scmp.eq.s32.totalorder %s26, 0
      %p191 = por %p189, %p190
      %p192 = scmp.ne.s32.totalorder %s184, %s186
      %p193 = scmp.eq.s32.totalorder %s31, 5
      %p194 = por %p192, %p193
      %p195 = scmp.ne.s32.totalorder %s186, %s187
      %p196 = scmp.eq.s32.totalorder %s31, 0
      %p197 = por %p195, %p196
      %p198 = scmp.ne.s32.totalorder %s186, %s187
      %p199 = scmp.eq.s32.totalorder %s32, 5
      %p200 = por %p198, %p199
      %p202 = scmp.ne.s32.totalorder %s187, %s201
      %p203 = scmp.eq.s32.totalorder %s32, 0
      %p204 = por %p202, %p203
      %s206 = sadd.s32 %s205, 1
      %p209 = scmp.eq.s32.totalorder %s26, 5
      %p210 = scmp.ne.s32.totalorder %s205, %s207
      %p211 = scmp.eq.s32.totalorder %s26, 0
      %p212 = por %p210, %p211
      %p213 = scmp.ne.s32.totalorder %s205, %s207
      %p214 = scmp.eq.s32.totalorder %s31, 5
      %p215 = por %p213, %p214
      %p216 = scmp.ne.s32.totalorder %s207, %s208
      %p217 = scmp.eq.s32.totalorder %s31, 0
      %p218 = por %p216, %p217
      %p219 = scmp.ne.s32.totalorder %s207, %s208
      %p220 = scmp.eq.s32.totalorder %s32, 5
      %p221 = por %p219, %p220
      %p223 = scmp.ne.s32.totalorder %s208, %s222
      %p224 = scmp.eq.s32.totalorder %s32, 0
      %p225 = por %p223, %p224
      %s226 = ssub.s32 %s33, %s45
      %p227 = scmp.eq.s32.totalorder %s226, 0
      %s229 = sadd.s32 %s228, 1
      %s230 = scalar_select %p227, %s228, %s229
      %p233 = pneg %p227
      %p234 = scmp.eq.s32.totalorder %s26, 5
      %p235 = por %p233, %p234
      %p236 = scmp.ne.s32.totalorder %s228, %s231
      %p237 = scmp.eq.s32.totalorder %s26, 0
      %p238 = por %p236, %p237
      %p239 = scmp.ne.s32.totalorder %s228, %s231
      %p240 = scmp.eq.s32.totalorder %s31, 5
      %p241 = por %p239, %p240
      %p242 = scmp.ne.s32.totalorder %s231, %s232
      %p243 = scmp.eq.s32.totalorder %s31, 0
      %p244 = por %p242, %p243
      %p245 = scmp.ne.s32.totalorder %s231, %s232
      %p246 = scmp.eq.s32.totalorder %s32, 5
      %p247 = por %p245, %p246
      %p249 = scmp.ne.s32.totalorder %s232, %s248
      %p250 = scmp.eq.s32.totalorder %s32, 0
      %p251 = por %p249, %p250
      %p252 = scmp.le.s32.totalorder 1, %s26
      %p253 = scmp.lt.s32.totalorder %s26, 7
      %p254 = pnand %p252, %p253
      %p255 = pneg %p254
      // Predicated region
      $region9: #{tpu_custom_call.1} parent=5 // pred_check
        _
      $region10: #{tpu_custom_call.1} parent=5 // pred_check_branch
        %257 = sbr.rel (%p254) target = $region12
      $region11: #{tpu_custom_call.1} parent=5 // pred_region
        %s258 = ssub.s32 %s26, 1
        // Predicated region
        $region13: #{tpu_custom_call.1} parent=11 // pred_check
          %p259 = pneg %p113
        $region14: #{tpu_custom_call.1} parent=11 // pred_check_branch
          %261 = sbr.rel (%p259) target = $region16
        $region15: #{tpu_custom_call.1} parent=11 // pred_region
          %263 = vsyncadd [#allocation7], 0
          %s264 = sshll.u32 %s2, 4
          %s265 = int_to_ptr.hbm [resolvable:$true] %s264
          %s266 = sshll.u32 [#allocation8], 4
          %s267 = int_to_ptr.vmem [resolvable:$true] %s266
          %272 = dma.hbm_to_vmem [thread:$0]  %s265, 2048, %s267, [#allocation7], 128, 128, 8
        $region16: #{tpu_custom_call.1} parent=11 // pred_fallthru
          _
        // Predicated region
        $region17: #{tpu_custom_call.1} parent=11 // pred_check
          %p273 = pneg %p134
        $region18: #{tpu_custom_call.1} parent=11 // pred_check_branch
          %275 = sbr.rel (%p273) target = $region20
        $region19: #{tpu_custom_call.1} parent=11 // pred_region
          %277 = vsyncadd [#allocation10], 0
          %s279 = sshll.u32 %s3, 4
          %s280 = int_to_ptr.hbm [resolvable:$true] %s279
          %s281 = sshll.u32 [#allocation9], 4
          %s282 = int_to_ptr.vmem [resolvable:$true] %s281
          %284 = dma.hbm_to_vmem [thread:$0]  %s280, 16, %s282, [#allocation10]
        $region20: #{tpu_custom_call.1} parent=11 // pred_fallthru
          _
        // Predicated region
        $region21: #{tpu_custom_call.1} parent=11 // pred_check
          %p285 = pneg %p155
        $region22: #{tpu_custom_call.1} parent=11 // pred_check_branch
          %287 = sbr.rel (%p285) target = $region24
        $region23: #{tpu_custom_call.1} parent=11 // pred_region
          %289 = vsyncadd [#allocation10], 0
          %s290 = sshll.u32 %s4, 4
          %s291 = int_to_ptr.hbm [resolvable:$true] %s290
          %s292 = sshll.u32 [#allocation11], 4
          %s293 = int_to_ptr.vmem [resolvable:$true] %s292
          %298 = dma.hbm_to_vmem [thread:$0]  %s291, 2048, %s293, [#allocation10], 128, 128, 8
        $region24: #{tpu_custom_call.1} parent=11 // pred_fallthru
          _
        // Predicated region
        $region25: #{tpu_custom_call.1} parent=11 // pred_check
          %p299 = pneg %p176
        $region26: #{tpu_custom_call.1} parent=11 // pred_check_branch
          %301 = sbr.rel (%p299) target = $region28
        $region27: #{tpu_custom_call.1} parent=11 // pred_region
          %303 = vsyncadd [#allocation13], 0
          %s305 = sshll.u32 %s5, 4
          %s306 = int_to_ptr.hbm [resolvable:$true] %s305
          %s307 = sshll.u32 [#allocation12], 4
          %s308 = int_to_ptr.vmem [resolvable:$true] %s307
          %310 = dma.hbm_to_vmem [thread:$0]  %s306, 16, %s308, [#allocation13]
        $region28: #{tpu_custom_call.1} parent=11 // pred_fallthru
          _
        // Predicated region
        $region29: #{tpu_custom_call.1} parent=11 // pred_check
          %p311 = pneg %p197
        $region30: #{tpu_custom_call.1} parent=11 // pred_check_branch
          %313 = sbr.rel (%p311) target = $region32
        $region31: #{tpu_custom_call.1} parent=11 // pred_region
          %315 = vsyncadd [#allocation13], 0
          %s316 = sshll.u32 %s6, 4
          %s317 = int_to_ptr.hbm [resolvable:$true] %s316
          %s318 = sshll.u32 [#allocation14], 4
          %s319 = int_to_ptr.vmem [resolvable:$true] %s318
          %324 = dma.hbm_to_vmem [thread:$0]  %s317, 2048, %s319, [#allocation13], 128, 128, 8
        $region32: #{tpu_custom_call.1} parent=11 // pred_fallthru
          _
        // Predicated region
        $region33: #{tpu_custom_call.1} parent=11 // pred_check
          %p325 = pneg %p218
        $region34: #{tpu_custom_call.1} parent=11 // pred_check_branch
          %327 = sbr.rel (%p325) target = $region36
        $region35: #{tpu_custom_call.1} parent=11 // pred_region
          %329 = vsyncadd [#allocation16], 0
          %s331 = sshll.u32 %s7, 4
          %s332 = int_to_ptr.hbm [resolvable:$true] %s331
          %s333 = sshll.u32 [#allocation15], 4
          %s334 = int_to_ptr.vmem [resolvable:$true] %s333
          %336 = dma.hbm_to_vmem [thread:$0]  %s332, 16, %s334, [#allocation16]
        $region36: #{tpu_custom_call.1} parent=11 // pred_fallthru
          _
      $region12: #{tpu_custom_call.1} parent=5 // pred_fallthru
        _
      %p337 = scmp.lt.s32.totalorder %s26, 6
      // Predicated region
      $region37: #{tpu_custom_call.1} parent=5 // pred_check
        %p338 = pneg %p337
      $region38: #{tpu_custom_call.1} parent=5 // pred_check_branch
        %340 = sbr.rel (%p338) target = $region40
      $region39: #{tpu_custom_call.1} parent=5 // pred_region
        // Predicated region
        $region41: #{tpu_custom_call.1} parent=39 // pred_check
          %p341 = pneg %p60
        $region42: #{tpu_custom_call.1} parent=39 // pred_check_branch
          %343 = sbr.rel (%p341) target = $region44
        $region43: #{tpu_custom_call.1} parent=39 // pred_region
          %s344 = sand.u32 %s50, 1
          %s345 = scalar_lea.sflag [#allocation4], %s344
          %s346 = sand.u32 %s50, 1
          %s347 = smul.addr %s346, 1024
          %s348 = scalar_lea.vmem [#allocation3], %s347
          %s349 = smul.u32 32, %s33
          %s350 = smul.u32 4, %s34
          %352 = vsyncadd %s345, 0
          %s353 = smul.addr %s349, 8
          %s354 = sadd.s32 %s350, %s353
          %s355 = smul.addr %s354, 8
          %s356 = scalar_lea.hbm %s0, %s355
          %s357 = sshll.u32 %s356, 4
          %s358 = int_to_ptr.hbm [resolvable:$true] %s357
          %s359 = sshll.u32 %s348, 4
          %s360 = int_to_ptr.vmem [resolvable:$true] %s359
          %365 = dma.hbm_to_vmem [thread:$0]  %s358, 16384, %s360, %s345, 1024, 512, 32
        $region44: #{tpu_custom_call.1} parent=39 // pred_fallthru
          _
        // Predicated region
        $region45: #{tpu_custom_call.1} parent=39 // pred_check
          %p366 = pneg %p86
        $region46: #{tpu_custom_call.1} parent=39 // pred_check_branch
          %368 = sbr.rel (%p366) target = $region48
        $region47: #{tpu_custom_call.1} parent=39 // pred_region
          %s369 = sand.u32 %s26, 1
          %s370 = scalar_lea.sflag [#allocation7], %s369
          %s371 = sand.u32 %s76, 1
          %s372 = smul.addr %s371, 512
          %s373 = scalar_lea.vmem [#allocation6], %s372
          %s374 = smul.u32 64, %s34
          %376 = vsyncadd %s370, 0
          %s377 = smul.addr %s374, 8
          %s378 = scalar_lea.hbm %s1, %s377
          %s379 = sshll.u32 %s378, 4
          %s380 = int_to_ptr.hbm [resolvable:$true] %s379
          %s381 = sshll.u32 %s373, 4
          %s382 = int_to_ptr.vmem [resolvable:$true] %s381
          %387 = dma.hbm_to_vmem [thread:$0]  %s380, 8192, %s382, %s370, 128, 128, 8
        $region48: #{tpu_custom_call.1} parent=39 // pred_fallthru
          _
      $region40: #{tpu_custom_call.1} parent=5 // pred_fallthru
        _
      %p388 = scmp.le.s32.totalorder 1, %s26
      %p389 = scmp.lt.s32.totalorder %s26, 7
      %p390 = pnand %p388, %p389
      %p391 = pneg %p390
      // Predicated region
      $region49: #{tpu_custom_call.1} parent=5 // pred_check
        _
      $region50: #{tpu_custom_call.1} parent=5 // pred_check_branch
        %393 = sbr.rel (%p390) target = $region52
      $region51: #{tpu_custom_call.1} parent=5 // pred_region
        %s394 = ssub.s32 %s26, 1
        %s395 = sand.u32 %s53, 1
        %s396 = scalar_lea.sflag [#allocation4], %s395
        %s397 = sand.u32 %s53, 1
        %s398 = smul.addr %s397, 1024
        %s399 = scalar_lea.vmem [#allocation3], %s398
        // Predicated region
        $region53: #{tpu_custom_call.1} parent=51 // pred_check
          %p400 = pneg %p66
        $region54: #{tpu_custom_call.1} parent=51 // pred_check_branch
          %402 = sbr.rel (%p400) target = $region56
        $region55: #{tpu_custom_call.1} parent=51 // pred_region
          %404 = dma.done %s396, 16384
        $region56: #{tpu_custom_call.1} parent=51 // pred_fallthru
          _
        %s405 = sand.u32 %s31, 1
        %s406 = scalar_lea.sflag [#allocation7], %s405
        %s407 = sand.u32 %s79, 1
        %s408 = smul.addr %s407, 512
        %s409 = scalar_lea.vmem [#allocation6], %s408
        // Predicated region
        $region57: #{tpu_custom_call.1} parent=51 // pred_check
          %p410 = pneg %p92
        $region58: #{tpu_custom_call.1} parent=51 // pred_check_branch
          %412 = sbr.rel (%p410) target = $region60
        $region59: #{tpu_custom_call.1} parent=51 // pred_region
          %414 = dma.done %s406, 8192
        $region60: #{tpu_custom_call.1} parent=51 // pred_fallthru
          _
        // Predicated region
        $region61: #{tpu_custom_call.1} parent=51 // pred_check
          %p415 = pneg %p113
        $region62: #{tpu_custom_call.1} parent=51 // pred_check_branch
          %417 = sbr.rel (%p415) target = $region64
        $region63: #{tpu_custom_call.1} parent=51 // pred_region
          %419 = dma.done [#allocation7], 2048
        $region64: #{tpu_custom_call.1} parent=51 // pred_fallthru
          _
        // Predicated region
        $region65: #{tpu_custom_call.1} parent=51 // pred_check
          %p420 = pneg %p134
        $region66: #{tpu_custom_call.1} parent=51 // pred_check_branch
          %422 = sbr.rel (%p420) target = $region68
        $region67: #{tpu_custom_call.1} parent=51 // pred_region
          %424 = dma.done [#allocation10], 16
        $region68: #{tpu_custom_call.1} parent=51 // pred_fallthru
          _
        // Predicated region
        $region69: #{tpu_custom_call.1} parent=51 // pred_check
          %p425 = pneg %p155
        $region70: #{tpu_custom_call.1} parent=51 // pred_check_branch
          %427 = sbr.rel (%p425) target = $region72
        $region71: #{tpu_custom_call.1} parent=51 // pred_region
          %429 = dma.done [#allocation10], 2048
        $region72: #{tpu_custom_call.1} parent=51 // pred_fallthru
          _
        // Predicated region
        $region73: #{tpu_custom_call.1} parent=51 // pred_check
          %p430 = pneg %p176
        $region74: #{tpu_custom_call.1} parent=51 // pred_check_branch
          %432 = sbr.rel (%p430) target = $region76
        $region75: #{tpu_custom_call.1} parent=51 // pred_region
          %434 = dma.done [#allocation13], 16
        $region76: #{tpu_custom_call.1} parent=51 // pred_fallthru
          _
        // Predicated region
        $region77: #{tpu_custom_call.1} parent=51 // pred_check
          %p435 = pneg %p197
        $region78: #{tpu_custom_call.1} parent=51 // pred_check_branch
          %437 = sbr.rel (%p435) target = $region80
        $region79: #{tpu_custom_call.1} parent=51 // pred_region
          %439 = dma.done [#allocation13], 2048
        $region80: #{tpu_custom_call.1} parent=51 // pred_fallthru
          _
        // Predicated region
        $region81: #{tpu_custom_call.1} parent=51 // pred_check
          %p440 = pneg %p218
        $region82: #{tpu_custom_call.1} parent=51 // pred_check_branch
          %442 = sbr.rel (%p440) target = $region84
        $region83: #{tpu_custom_call.1} parent=51 // pred_region
          %444 = dma.done [#allocation16], 16
        $region84: #{tpu_custom_call.1} parent=51 // pred_fallthru
          _
        %s445 = sand.u32 %s53, 1
        %s446 = scalar_lea.sflag [#allocation4], %s445
        %s447 = sand.u32 %s53, 1
        %s448 = smul.addr %s447, 1024
        %s449 = scalar_lea.vmem [#allocation3], %s448
        %p450 = pneg %p66
        %p451 = pneg %p63
        %s452 = sand.u32 %s31, 1
        %s453 = scalar_lea.sflag [#allocation7], %s452
        %s454 = sand.u32 %s79, 1
        %s455 = smul.addr %s454, 512
        %s456 = scalar_lea.vmem [#allocation6], %s455
        %p457 = pneg %p92
        %p458 = pneg %p89
        %p459 = pneg %p113
        %p460 = pneg %p110
        %p461 = pneg %p134
        %p462 = pneg %p131
        %p463 = pneg %p155
        %p464 = pneg %p152
        %p465 = pneg %p176
        %p466 = pneg %p173
        %p467 = pneg %p197
        %p468 = pneg %p194
        %p469 = pneg %p218
        %p470 = pneg %p215
        %p471 = pneg %p244
        %p472 = pneg %p241
        %s473 = sand.u32 %s231, 1
        %s474 = scalar_lea.sflag [#allocation5], %s473
        %s475 = sand.u32 %s231, 1
        %s476 = smul.addr %s475, 256
        %s477 = scalar_lea.vmem [#allocation17], %s476
        %s478 = smul.u32 32, %s35
        %s479 = smul.u32 4, %s36
        %s480 = smul.u32 64, %s36
        %s481 = smul.u32 32, %s35
        %p482 = scmp.eq.s32.totalorder %s36, 0
        // Predicated region
        $region85: #{tpu_custom_call.1} parent=51 // pred_check
          %p483 = pneg %p482
        $region86: #{tpu_custom_call.1} parent=51 // pred_check_branch
          %485 = sbr.rel (%p483) target = $region88
        $region87: #{tpu_custom_call.1} parent=51 // pred_region
          %486 = vst [vmem:[#allocation2] sm:$0xff] 0.0
          %487 = vst [vmem:[#allocation2 + $0x8] sm:$0xff] 0.0
          %488 = vst [vmem:[#allocation2 + $0x10] sm:$0xff] 0.0
          %489 = vst [vmem:[#allocation2 + $0x18] sm:$0xff] 0.0
          %490 = vst [vmem:[#allocation2 + $0x20] sm:$0xff] 0.0
          %491 = vst [vmem:[#allocation2 + $0x28] sm:$0xff] 0.0
          %492 = vst [vmem:[#allocation2 + $0x30] sm:$0xff] 0.0
          %493 = vst [vmem:[#allocation2 + $0x38] sm:$0xff] 0.0
          %494 = vst [vmem:[#allocation2 + $0x40] sm:$0xff] 0.0
          %495 = vst [vmem:[#allocation2 + $0x48] sm:$0xff] 0.0
          %496 = vst [vmem:[#allocation2 + $0x50] sm:$0xff] 0.0
          %497 = vst [vmem:[#allocation2 + $0x58] sm:$0xff] 0.0
          %498 = vst [vmem:[#allocation2 + $0x60] sm:$0xff] 0.0
          %499 = vst [vmem:[#allocation2 + $0x68] sm:$0xff] 0.0
          %500 = vst [vmem:[#allocation2 + $0x70] sm:$0xff] 0.0
          %501 = vst [vmem:[#allocation2 + $0x78] sm:$0xff] 0.0
          %502 = vst [vmem:[#allocation2 + $0x80] sm:$0xff] 0.0
          %503 = vst [vmem:[#allocation2 + $0x88] sm:$0xff] 0.0
          %504 = vst [vmem:[#allocation2 + $0x90] sm:$0xff] 0.0
          %505 = vst [vmem:[#allocation2 + $0x98] sm:$0xff] 0.0
          %506 = vst [vmem:[#allocation2 + $0xa0] sm:$0xff] 0.0
          %507 = vst [vmem:[#allocation2 + $0xa8] sm:$0xff] 0.0
          %508 = vst [vmem:[#allocation2 + $0xb0] sm:$0xff] 0.0
          %509 = vst [vmem:[#allocation2 + $0xb8] sm:$0xff] 0.0
          %510 = vst [vmem:[#allocation2 + $0xc0] sm:$0xff] 0.0
          %511 = vst [vmem:[#allocation2 + $0xc8] sm:$0xff] 0.0
          %512 = vst [vmem:[#allocation2 + $0xd0] sm:$0xff] 0.0
          %513 = vst [vmem:[#allocation2 + $0xd8] sm:$0xff] 0.0
          %514 = vst [vmem:[#allocation2 + $0xe0] sm:$0xff] 0.0
          %515 = vst [vmem:[#allocation2 + $0xe8] sm:$0xff] 0.0
          %516 = vst [vmem:[#allocation2 + $0xf0] sm:$0xff] 0.0
          %517 = vst [vmem:[#allocation2 + $0xf8] sm:$0xff] 0.0
        $region88: #{tpu_custom_call.1} parent=51 // pred_fallthru
          _
        %v518 = vld [vmem:[#allocation2] sm:$0xff]
        %v519 = vld [vmem:[#allocation2 + $0x8] sm:$0xff]
        %v520 = vld [vmem:[#allocation2 + $0x10] sm:$0xff]
        %v521 = vld [vmem:[#allocation2 + $0x18] sm:$0xff]
        %v522 = vld [vmem:[#allocation2 + $0x20] sm:$0xff]
        %v523 = vld [vmem:[#allocation2 + $0x28] sm:$0xff]
        %v524 = vld [vmem:[#allocation2 + $0x30] sm:$0xff]
        %v525 = vld [vmem:[#allocation2 + $0x38] sm:$0xff]
        %v526 = vld [vmem:[#allocation2 + $0x40] sm:$0xff]
        %v527 = vld [vmem:[#allocation2 + $0x48] sm:$0xff]
        %v528 = vld [vmem:[#allocation2 + $0x50] sm:$0xff]
        %v529 = vld [vmem:[#allocation2 + $0x58] sm:$0xff]
        %v530 = vld [vmem:[#allocation2 + $0x60] sm:$0xff]
        %v531 = vld [vmem:[#allocation2 + $0x68] sm:$0xff]
        %v532 = vld [vmem:[#allocation2 + $0x70] sm:$0xff]
        %v533 = vld [vmem:[#allocation2 + $0x78] sm:$0xff]
        %v534 = vld [vmem:[#allocation2 + $0x80] sm:$0xff]
        %v535 = vld [vmem:[#allocation2 + $0x88] sm:$0xff]
        %v536 = vld [vmem:[#allocation2 + $0x90] sm:$0xff]
        %v537 = vld [vmem:[#allocation2 + $0x98] sm:$0xff]
        %v538 = vld [vmem:[#allocation2 + $0xa0] sm:$0xff]
        %v539 = vld [vmem:[#allocation2 + $0xa8] sm:$0xff]
        %v540 = vld [vmem:[#allocation2 + $0xb0] sm:$0xff]
        %v541 = vld [vmem:[#allocation2 + $0xb8] sm:$0xff]
        %v542 = vld [vmem:[#allocation2 + $0xc0] sm:$0xff]
        %v543 = vld [vmem:[#allocation2 + $0xc8] sm:$0xff]
        %v544 = vld [vmem:[#allocation2 + $0xd0] sm:$0xff]
        %v545 = vld [vmem:[#allocation2 + $0xd8] sm:$0xff]
        %v546 = vld [vmem:[#allocation2 + $0xe0] sm:$0xff]
        %v547 = vld [vmem:[#allocation2 + $0xe8] sm:$0xff]
        %v548 = vld [vmem:[#allocation2 + $0xf0] sm:$0xff]
        %v549 = vld [vmem:[#allocation2 + $0xf8] sm:$0xff]
        %v550 = vld [vmem:[%s399] sm:$0xff]
        %v551 = vld [vmem:[%s399 + $0x8] sm:$0xff]
        %v552 = vld [vmem:[%s399 + $0x10] sm:$0xff]
        %v553 = vld [vmem:[%s399 + $0x18] sm:$0xff]
        %v554 = vld [vmem:[%s399 + $0x20] sm:$0xff]
        %v555 = vld [vmem:[%s399 + $0x28] sm:$0xff]
        %v556 = vld [vmem:[%s399 + $0x30] sm:$0xff]
        %v557 = vld [vmem:[%s399 + $0x38] sm:$0xff]
        %v558 = vld [vmem:[%s399 + $0x40] sm:$0xff]
        %v559 = vld [vmem:[%s399 + $0x48] sm:$0xff]
        %v560 = vld [vmem:[%s399 + $0x50] sm:$0xff]
        %v561 = vld [vmem:[%s399 + $0x58] sm:$0xff]
        %v562 = vld [vmem:[%s399 + $0x60] sm:$0xff]
        %v563 = vld [vmem:[%s399 + $0x68] sm:$0xff]
        %v564 = vld [vmem:[%s399 + $0x70] sm:$0xff]
        %v565 = vld [vmem:[%s399 + $0x78] sm:$0xff]
        %v566 = vld [vmem:[%s399 + $0x80] sm:$0xff]
        %v567 = vld [vmem:[%s399 + $0x88] sm:$0xff]
        %v568 = vld [vmem:[%s399 + $0x90] sm:$0xff]
        %v569 = vld [vmem:[%s399 + $0x98] sm:$0xff]
        %v570 = vld [vmem:[%s399 + $0xa0] sm:$0xff]
        %v571 = vld [vmem:[%s399 + $0xa8] sm:$0xff]
        %v572 = vld [vmem:[%s399 + $0xb0] sm:$0xff]
        %v573 = vld [vmem:[%s399 + $0xb8] sm:$0xff]
        %v574 = vld [vmem:[%s399 + $0xc0] sm:$0xff]
        %v575 = vld [vmem:[%s399 + $0xc8] sm:$0xff]
        %v576 = vld [vmem:[%s399 + $0xd0] sm:$0xff]
        %v577 = vld [vmem:[%s399 + $0xd8] sm:$0xff]
        %v578 = vld [vmem:[%s399 + $0xe0] sm:$0xff]
        %v579 = vld [vmem:[%s399 + $0xe8] sm:$0xff]
        %v580 = vld [vmem:[%s399 + $0xf0] sm:$0xff]
        %v581 = vld [vmem:[%s399 + $0xf8] sm:$0xff]
        %v582 = vld [vmem:[%s399 + $0x100] sm:$0xff]
        %v583 = vld [vmem:[%s399 + $0x108] sm:$0xff]
        %v584 = vld [vmem:[%s399 + $0x110] sm:$0xff]
        %v585 = vld [vmem:[%s399 + $0x118] sm:$0xff]
        %v586 = vld [vmem:[%s399 + $0x120] sm:$0xff]
        %v587 = vld [vmem:[%s399 + $0x128] sm:$0xff]
        %v588 = vld [vmem:[%s399 + $0x130] sm:$0xff]
        %v589 = vld [vmem:[%s399 + $0x138] sm:$0xff]
        %v590 = vld [vmem:[%s399 + $0x140] sm:$0xff]
        %v591 = vld [vmem:[%s399 + $0x148] sm:$0xff]
        %v592 = vld [vmem:[%s399 + $0x150] sm:$0xff]
        %v593 = vld [vmem:[%s399 + $0x158] sm:$0xff]
        %v594 = vld [vmem:[%s399 + $0x160] sm:$0xff]
        %v595 = vld [vmem:[%s399 + $0x168] sm:$0xff]
        %v596 = vld [vmem:[%s399 + $0x170] sm:$0xff]
        %v597 = vld [vmem:[%s399 + $0x178] sm:$0xff]
        %v598 = vld [vmem:[%s399 + $0x180] sm:$0xff]
        %v599 = vld [vmem:[%s399 + $0x188] sm:$0xff]
        %v600 = vld [vmem:[%s399 + $0x190] sm:$0xff]
        %v601 = vld [vmem:[%s399 + $0x198] sm:$0xff]
        %v602 = vld [vmem:[%s399 + $0x1a0] sm:$0xff]
        %v603 = vld [vmem:[%s399 + $0x1a8] sm:$0xff]
        %v604 = vld [vmem:[%s399 + $0x1b0] sm:$0xff]
        %v605 = vld [vmem:[%s399 + $0x1b8] sm:$0xff]
        %v606 = vld [vmem:[%s399 + $0x1c0] sm:$0xff]
        %v607 = vld [vmem:[%s399 + $0x1c8] sm:$0xff]
        %v608 = vld [vmem:[%s399 + $0x1d0] sm:$0xff]
        %v609 = vld [vmem:[%s399 + $0x1d8] sm:$0xff]
        %v610 = vld [vmem:[%s399 + $0x1e0] sm:$0xff]
        %v611 = vld [vmem:[%s399 + $0x1e8] sm:$0xff]
        %v612 = vld [vmem:[%s399 + $0x1f0] sm:$0xff]
        %v613 = vld [vmem:[%s399 + $0x1f8] sm:$0xff]
        %v614 = vld [vmem:[%s399 + $0x200] sm:$0xff]
        %v615 = vld [vmem:[%s399 + $0x208] sm:$0xff]
        %v616 = vld [vmem:[%s399 + $0x210] sm:$0xff]
        %v617 = vld [vmem:[%s399 + $0x218] sm:$0xff]
        %v618 = vld [vmem:[%s399 + $0x220] sm:$0xff]
        %v619 = vld [vmem:[%s399 + $0x228] sm:$0xff]
        %v620 = vld [vmem:[%s399 + $0x230] sm:$0xff]
        %v621 = vld [vmem:[%s399 + $0x238] sm:$0xff]
        %v622 = vld [vmem:[%s399 + $0x240] sm:$0xff]
        %v623 = vld [vmem:[%s399 + $0x248] sm:$0xff]
        %v624 = vld [vmem:[%s399 + $0x250] sm:$0xff]
        %v625 = vld [vmem:[%s399 + $0x258] sm:$0xff]
        %v626 = vld [vmem:[%s399 + $0x260] sm:$0xff]
        %v627 = vld [vmem:[%s399 + $0x268] sm:$0xff]
        %v628 = vld [vmem:[%s399 + $0x270] sm:$0xff]
        %v629 = vld [vmem:[%s399 + $0x278] sm:$0xff]
        %v630 = vld [vmem:[%s399 + $0x280] sm:$0xff]
        %v631 = vld [vmem:[%s399 + $0x288] sm:$0xff]
        %v632 = vld [vmem:[%s399 + $0x290] sm:$0xff]
        %v633 = vld [vmem:[%s399 + $0x298] sm:$0xff]
        %v634 = vld [vmem:[%s399 + $0x2a0] sm:$0xff]
        %v635 = vld [vmem:[%s399 + $0x2a8] sm:$0xff]
        %v636 = vld [vmem:[%s399 + $0x2b0] sm:$0xff]
        %v637 = vld [vmem:[%s399 + $0x2b8] sm:$0xff]
        %v638 = vld [vmem:[%s399 + $0x2c0] sm:$0xff]
        %v639 = vld [vmem:[%s399 + $0x2c8] sm:$0xff]
        %v640 = vld [vmem:[%s399 + $0x2d0] sm:$0xff]
        %v641 = vld [vmem:[%s399 + $0x2d8] sm:$0xff]
        %v642 = vld [vmem:[%s399 + $0x2e0] sm:$0xff]
        %v643 = vld [vmem:[%s399 + $0x2e8] sm:$0xff]
        %v644 = vld [vmem:[%s399 + $0x2f0] sm:$0xff]
        %v645 = vld [vmem:[%s399 + $0x2f8] sm:$0xff]
        %v646 = vld [vmem:[%s399 + $0x300] sm:$0xff]
        %v647 = vld [vmem:[%s399 + $0x308] sm:$0xff]
        %v648 = vld [vmem:[%s399 + $0x310] sm:$0xff]
        %v649 = vld [vmem:[%s399 + $0x318] sm:$0xff]
        %v650 = vld [vmem:[%s399 + $0x320] sm:$0xff]
        %v651 = vld [vmem:[%s399 + $0x328] sm:$0xff]
        %v652 = vld [vmem:[%s399 + $0x330] sm:$0xff]
        %v653 = vld [vmem:[%s399 + $0x338] sm:$0xff]
        %v654 = vld [vmem:[%s399 + $0x340] sm:$0xff]
        %v655 = vld [vmem:[%s399 + $0x348] sm:$0xff]
        %v656 = vld [vmem:[%s399 + $0x350] sm:$0xff]
        %v657 = vld [vmem:[%s399 + $0x358] sm:$0xff]
        %v658 = vld [vmem:[%s399 + $0x360] sm:$0xff]
        %v659 = vld [vmem:[%s399 + $0x368] sm:$0xff]
        %v660 = vld [vmem:[%s399 + $0x370] sm:$0xff]
        %v661 = vld [vmem:[%s399 + $0x378] sm:$0xff]
        %v662 = vld [vmem:[%s399 + $0x380] sm:$0xff]
        %v663 = vld [vmem:[%s399 + $0x388] sm:$0xff]
        %v664 = vld [vmem:[%s399 + $0x390] sm:$0xff]
        %v665 = vld [vmem:[%s399 + $0x398] sm:$0xff]
        %v666 = vld [vmem:[%s399 + $0x3a0] sm:$0xff]
        %v667 = vld [vmem:[%s399 + $0x3a8] sm:$0xff]
        %v668 = vld [vmem:[%s399 + $0x3b0] sm:$0xff]
        %v669 = vld [vmem:[%s399 + $0x3b8] sm:$0xff]
        %v670 = vld [vmem:[%s399 + $0x3c0] sm:$0xff]
        %v671 = vld [vmem:[%s399 + $0x3c8] sm:$0xff]
        %v672 = vld [vmem:[%s399 + $0x3d0] sm:$0xff]
        %v673 = vld [vmem:[%s399 + $0x3d8] sm:$0xff]
        %v674 = vld [vmem:[%s399 + $0x3e0] sm:$0xff]
        %v675 = vld [vmem:[%s399 + $0x3e8] sm:$0xff]
        %v676 = vld [vmem:[%s399 + $0x3f0] sm:$0xff]
        %v677 = vld [vmem:[%s399 + $0x3f8] sm:$0xff]
        %v678 = vld [vmem:[%s409] sm:$0xff]
        %v679 = vld [vmem:[%s409 + $0x8] sm:$0xff]
        %v680 = vld [vmem:[%s409 + $0x10] sm:$0xff]
        %v681 = vld [vmem:[%s409 + $0x18] sm:$0xff]
        %v682 = vld [vmem:[%s409 + $0x20] sm:$0xff]
        %v683 = vld [vmem:[%s409 + $0x28] sm:$0xff]
        %v684 = vld [vmem:[%s409 + $0x30] sm:$0xff]
        %v685 = vld [vmem:[%s409 + $0x38] sm:$0xff]
        %v686 = vld [vmem:[%s409 + $0x40] sm:$0xff]
        %v687 = vld [vmem:[%s409 + $0x48] sm:$0xff]
        %v688 = vld [vmem:[%s409 + $0x50] sm:$0xff]
        %v689 = vld [vmem:[%s409 + $0x58] sm:$0xff]
        %v690 = vld [vmem:[%s409 + $0x60] sm:$0xff]
        %v691 = vld [vmem:[%s409 + $0x68] sm:$0xff]
        %v692 = vld [vmem:[%s409 + $0x70] sm:$0xff]
        %v693 = vld [vmem:[%s409 + $0x78] sm:$0xff]
        %v694 = vld [vmem:[%s409 + $0x80] sm:$0xff]
        %v695 = vld [vmem:[%s409 + $0x88] sm:$0xff]
        %v696 = vld [vmem:[%s409 + $0x90] sm:$0xff]
        %v697 = vld [vmem:[%s409 + $0x98] sm:$0xff]
        %v698 = vld [vmem:[%s409 + $0xa0] sm:$0xff]
        %v699 = vld [vmem:[%s409 + $0xa8] sm:$0xff]
        %v700 = vld [vmem:[%s409 + $0xb0] sm:$0xff]
        %v701 = vld [vmem:[%s409 + $0xb8] sm:$0xff]
        %v702 = vld [vmem:[%s409 + $0xc0] sm:$0xff]
        %v703 = vld [vmem:[%s409 + $0xc8] sm:$0xff]
        %v704 = vld [vmem:[%s409 + $0xd0] sm:$0xff]
        %v705 = vld [vmem:[%s409 + $0xd8] sm:$0xff]
        %v706 = vld [vmem:[%s409 + $0xe0] sm:$0xff]
        %v707 = vld [vmem:[%s409 + $0xe8] sm:$0xff]
        %v708 = vld [vmem:[%s409 + $0xf0] sm:$0xff]
        %v709 = vld [vmem:[%s409 + $0xf8] sm:$0xff]
        %v710 = vld [vmem:[%s409 + $0x100] sm:$0xff]
        %v711 = vld [vmem:[%s409 + $0x108] sm:$0xff]
        %v712 = vld [vmem:[%s409 + $0x110] sm:$0xff]
        %v713 = vld [vmem:[%s409 + $0x118] sm:$0xff]
        %v714 = vld [vmem:[%s409 + $0x120] sm:$0xff]
        %v715 = vld [vmem:[%s409 + $0x128] sm:$0xff]
        %v716 = vld [vmem:[%s409 + $0x130] sm:$0xff]
        %v717 = vld [vmem:[%s409 + $0x138] sm:$0xff]
        %v718 = vld [vmem:[%s409 + $0x140] sm:$0xff]
        %v719 = vld [vmem:[%s409 + $0x148] sm:$0xff]
        %v720 = vld [vmem:[%s409 + $0x150] sm:$0xff]
        %v721 = vld [vmem:[%s409 + $0x158] sm:$0xff]
        %v722 = vld [vmem:[%s409 + $0x160] sm:$0xff]
        %v723 = vld [vmem:[%s409 + $0x168] sm:$0xff]
        %v724 = vld [vmem:[%s409 + $0x170] sm:$0xff]
        %v725 = vld [vmem:[%s409 + $0x178] sm:$0xff]
        %v726 = vld [vmem:[%s409 + $0x180] sm:$0xff]
        %v727 = vld [vmem:[%s409 + $0x188] sm:$0xff]
        %v728 = vld [vmem:[%s409 + $0x190] sm:$0xff]
        %v729 = vld [vmem:[%s409 + $0x198] sm:$0xff]
        %v730 = vld [vmem:[%s409 + $0x1a0] sm:$0xff]
        %v731 = vld [vmem:[%s409 + $0x1a8] sm:$0xff]
        %v732 = vld [vmem:[%s409 + $0x1b0] sm:$0xff]
        %v733 = vld [vmem:[%s409 + $0x1b8] sm:$0xff]
        %v734 = vld [vmem:[%s409 + $0x1c0] sm:$0xff]
        %v735 = vld [vmem:[%s409 + $0x1c8] sm:$0xff]
        %v736 = vld [vmem:[%s409 + $0x1d0] sm:$0xff]
        %v737 = vld [vmem:[%s409 + $0x1d8] sm:$0xff]
        %v738 = vld [vmem:[%s409 + $0x1e0] sm:$0xff]
        %v739 = vld [vmem:[%s409 + $0x1e8] sm:$0xff]
        %v740 = vld [vmem:[%s409 + $0x1f0] sm:$0xff]
        %v741 = vld [vmem:[%s409 + $0x1f8] sm:$0xff]
        %742 = vmatpush.msra.mxu0 %v693
        %743 = vmatpush.msra.mxu0 %v692
        %744 = vmatpush.msra.mxu0 %v691
        %745 = vmatpush.msra.mxu0 %v690
        %746 = vmatpush.msra.mxu0 %v689
        %747 = vmatpush.msra.mxu0 %v688
        %748 = vmatpush.msra.mxu0 %v687
        %749 = vmatpush.msra.mxu0 %v686
        %750 = vmatpush.msra.mxu0 %v685
        %751 = vmatpush.msra.mxu0 %v684
        %752 = vmatpush.msra.mxu0 %v683
        %753 = vmatpush.msra.mxu0 %v682
        %754 = vmatpush.msra.mxu0 %v681
        %755 = vmatpush.msra.mxu0 %v680
        %756 = vmatpush.msra.mxu0 %v679
        %757 = vmatpush.msra.mxu0 %v678
        %758 = vmatmul.f32.gmra.mxu0 %v550
        %v759 = vpop.f32.mrf.mxu0
        %v760 = vadd.f32 0.0, %v759
        %761 = vmatmul.f32.gmra.mxu0 %v554
        %v762 = vpop.f32.mrf.mxu0
        %v763 = vadd.f32 0.0, %v762
        %764 = vmatmul.f32.gmra.mxu0 %v558
        %v765 = vpop.f32.mrf.mxu0
        %v766 = vadd.f32 0.0, %v765
        %767 = vmatmul.f32.gmra.mxu0 %v562
        %v768 = vpop.f32.mrf.mxu0
        %v769 = vadd.f32 0.0, %v768
        %770 = vmatmul.f32.gmra.mxu0 %v566
        %v771 = vpop.f32.mrf.mxu0
        %v772 = vadd.f32 0.0, %v771
        %773 = vmatmul.f32.gmra.mxu0 %v570
        %v774 = vpop.f32.mrf.mxu0
        %v775 = vadd.f32 0.0, %v774
        %776 = vmatmul.f32.gmra.mxu0 %v574
        %v777 = vpop.f32.mrf.mxu0
        %v778 = vadd.f32 0.0, %v777
        %779 = vmatmul.f32.gmra.mxu0 %v578
        %v780 = vpop.f32.mrf.mxu0
        %v781 = vadd.f32 0.0, %v780
        %782 = vmatmul.f32.gmra.mxu0 %v582
        %v783 = vpop.f32.mrf.mxu0
        %v784 = vadd.f32 0.0, %v783
        %785 = vmatmul.f32.gmra.mxu0 %v586
        %v786 = vpop.f32.mrf.mxu0
        %v787 = vadd.f32 0.0, %v786
        %788 = vmatmul.f32.gmra.mxu0 %v590
        %v789 = vpop.f32.mrf.mxu0
        %v790 = vadd.f32 0.0, %v789
        %791 = vmatmul.f32.gmra.mxu0 %v594
        %v792 = vpop.f32.mrf.mxu0
        %v793 = vadd.f32 0.0, %v792
        %794 = vmatmul.f32.gmra.mxu0 %v598
        %v795 = vpop.f32.mrf.mxu0
        %v796 = vadd.f32 0.0, %v795
        %797 = vmatmul.f32.gmra.mxu0 %v602
        %v798 = vpop.f32.mrf.mxu0
        %v799 = vadd.f32 0.0, %v798
        %800 = vmatmul.f32.gmra.mxu0 %v606
        %v801 = vpop.f32.mrf.mxu0
        %v802 = vadd.f32 0.0, %v801
        %803 = vmatmul.f32.gmra.mxu0 %v610
        %v804 = vpop.f32.mrf.mxu0
        %v805 = vadd.f32 0.0, %v804
        %806 = vmatmul.f32.gmra.mxu0 %v614
        %v807 = vpop.f32.mrf.mxu0
        %v808 = vadd.f32 0.0, %v807
        %809 = vmatmul.f32.gmra.mxu0 %v618
        %v810 = vpop.f32.mrf.mxu0
        %v811 = vadd.f32 0.0, %v810
        %812 = vmatmul.f32.gmra.mxu0 %v622
        %v813 = vpop.f32.mrf.mxu0
        %v814 = vadd.f32 0.0, %v813
        %815 = vmatmul.f32.gmra.mxu0 %v626
        %v816 = vpop.f32.mrf.mxu0
        %v817 = vadd.f32 0.0, %v816
        %818 = vmatmul.f32.gmra.mxu0 %v630
        %v819 = vpop.f32.mrf.mxu0
        %v820 = vadd.f32 0.0, %v819
        %821 = vmatmul.f32.gmra.mxu0 %v634
        %v822 = vpop.f32.mrf.mxu0
        %v823 = vadd.f32 0.0, %v822
        %824 = vmatmul.f32.gmra.mxu0 %v638
        %v825 = vpop.f32.mrf.mxu0
        %v826 = vadd.f32 0.0, %v825
        %827 = vmatmul.f32.gmra.mxu0 %v642
        %v828 = vpop.f32.mrf.mxu0
        %v829 = vadd.f32 0.0, %v828
        %830 = vmatmul.f32.gmra.mxu0 %v646
        %v831 = vpop.f32.mrf.mxu0
        %v832 = vadd.f32 0.0, %v831
        %833 = vmatmul.f32.gmra.mxu0 %v650
        %v834 = vpop.f32.mrf.mxu0
        %v835 = vadd.f32 0.0, %v834
        %836 = vmatmul.f32.gmra.mxu0 %v654
        %v837 = vpop.f32.mrf.mxu0
        %v838 = vadd.f32 0.0, %v837
        %839 = vmatmul.f32.gmra.mxu0 %v658
        %v840 = vpop.f32.mrf.mxu0
        %v841 = vadd.f32 0.0, %v840
        %842 = vmatmul.f32.gmra.mxu0 %v662
        %v843 = vpop.f32.mrf.mxu0
        %v844 = vadd.f32 0.0, %v843
        %845 = vmatmul.f32.gmra.mxu0 %v666
        %v846 = vpop.f32.mrf.mxu0
        %v847 = vadd.f32 0.0, %v846
        %848 = vmatmul.f32.gmra.mxu0 %v670
        %v849 = vpop.f32.mrf.mxu0
        %v850 = vadd.f32 0.0, %v849
        %851 = vmatmul.f32.gmra.mxu0 %v674
        %v852 = vpop.f32.mrf.mxu0
        %v853 = vadd.f32 0.0, %v852
        %854 = vdwg.mxu0
        %855 = vmatpush.msra.mxu0 %v709
        %856 = vmatpush.msra.mxu0 %v708
        %857 = vmatpush.msra.mxu0 %v707
        %858 = vmatpush.msra.mxu0 %v706
        %859 = vmatpush.msra.mxu0 %v705
        %860 = vmatpush.msra.mxu0 %v704
        %861 = vmatpush.msra.mxu0 %v703
        %862 = vmatpush.msra.mxu0 %v702
        %863 = vmatpush.msra.mxu0 %v701
        %864 = vmatpush.msra.mxu0 %v700
        %865 = vmatpush.msra.mxu0 %v699
        %866 = vmatpush.msra.mxu0 %v698
        %867 = vmatpush.msra.mxu0 %v697
        %868 = vmatpush.msra.mxu0 %v696
        %869 = vmatpush.msra.mxu0 %v695
        %870 = vmatpush.msra.mxu0 %v694
        %871 = vmatmul.f32.gmra.mxu0 %v551
        %v872 = vpop.f32.mrf.mxu0
        %v873 = vadd.f32 %v760, %v872
        %874 = vmatmul.f32.gmra.mxu0 %v555
        %v875 = vpop.f32.mrf.mxu0
        %v876 = vadd.f32 %v763, %v875
        %877 = vmatmul.f32.gmra.mxu0 %v559
        %v878 = vpop.f32.mrf.mxu0
        %v879 = vadd.f32 %v766, %v878
        %880 = vmatmul.f32.gmra.mxu0 %v563
        %v881 = vpop.f32.mrf.mxu0
        %v882 = vadd.f32 %v769, %v881
        %883 = vmatmul.f32.gmra.mxu0 %v567
        %v884 = vpop.f32.mrf.mxu0
        %v885 = vadd.f32 %v772, %v884
        %886 = vmatmul.f32.gmra.mxu0 %v571
        %v887 = vpop.f32.mrf.mxu0
        %v888 = vadd.f32 %v775, %v887
        %889 = vmatmul.f32.gmra.mxu0 %v575
        %v890 = vpop.f32.mrf.mxu0
        %v891 = vadd.f32 %v778, %v890
        %892 = vmatmul.f32.gmra.mxu0 %v579
        %v893 = vpop.f32.mrf.mxu0
        %v894 = vadd.f32 %v781, %v893
        %895 = vmatmul.f32.gmra.mxu0 %v583
        %v896 = vpop.f32.mrf.mxu0
        %v897 = vadd.f32 %v784, %v896
        %898 = vmatmul.f32.gmra.mxu0 %v587
        %v899 = vpop.f32.mrf.mxu0
        %v900 = vadd.f32 %v787, %v899
        %901 = vmatmul.f32.gmra.mxu0 %v591
        %v902 = vpop.f32.mrf.mxu0
        %v903 = vadd.f32 %v790, %v902
        %904 = vmatmul.f32.gmra.mxu0 %v595
        %v905 = vpop.f32.mrf.mxu0
        %v906 = vadd.f32 %v793, %v905
        %907 = vmatmul.f32.gmra.mxu0 %v599
        %v908 = vpop.f32.mrf.mxu0
        %v909 = vadd.f32 %v796, %v908
        %910 = vmatmul.f32.gmra.mxu0 %v603
        %v911 = vpop.f32.mrf.mxu0
        %v912 = vadd.f32 %v799, %v911
        %913 = vmatmul.f32.gmra.mxu0 %v607
        %v914 = vpop.f32.mrf.mxu0
        %v915 = vadd.f32 %v802, %v914
        %916 = vmatmul.f32.gmra.mxu0 %v611
        %v917 = vpop.f32.mrf.mxu0
        %v918 = vadd.f32 %v805, %v917
        %919 = vmatmul.f32.gmra.mxu0 %v615
        %v920 = vpop.f32.mrf.mxu0
        %v921 = vadd.f32 %v808, %v920
        %922 = vmatmul.f32.gmra.mxu0 %v619
        %v923 = vpop.f32.mrf.mxu0
        %v924 = vadd.f32 %v811, %v923
        %925 = vmatmul.f32.gmra.mxu0 %v623
        %v926 = vpop.f32.mrf.mxu0
        %v927 = vadd.f32 %v814, %v926
        %928 = vmatmul.f32.gmra.mxu0 %v627
        %v929 = vpop.f32.mrf.mxu0
        %v930 = vadd.f32 %v817, %v929
        %931 = vmatmul.f32.gmra.mxu0 %v631
        %v932 = vpop.f32.mrf.mxu0
        %v933 = vadd.f32 %v820, %v932
        %934 = vmatmul.f32.gmra.mxu0 %v635
        %v935 = vpop.f32.mrf.mxu0
        %v936 = vadd.f32 %v823, %v935
        %937 = vmatmul.f32.gmra.mxu0 %v639
        %v938 = vpop.f32.mrf.mxu0
        %v939 = vadd.f32 %v826, %v938
        %940 = vmatmul.f32.gmra.mxu0 %v643
        %v941 = vpop.f32.mrf.mxu0
        %v942 = vadd.f32 %v829, %v941
        %943 = vmatmul.f32.gmra.mxu0 %v647
        %v944 = vpop.f32.mrf.mxu0
        %v945 = vadd.f32 %v832, %v944
        %946 = vmatmul.f32.gmra.mxu0 %v651
        %v947 = vpop.f32.mrf.mxu0
        %v948 = vadd.f32 %v835, %v947
        %949 = vmatmul.f32.gmra.mxu0 %v655
        %v950 = vpop.f32.mrf.mxu0
        %v951 = vadd.f32 %v838, %v950
        %952 = vmatmul.f32.gmra.mxu0 %v659
        %v953 = vpop.f32.mrf.mxu0
        %v954 = vadd.f32 %v841, %v953
        %955 = vmatmul.f32.gmra.mxu0 %v663
        %v956 = vpop.f32.mrf.mxu0
        %v957 = vadd.f32 %v844, %v956
        %958 = vmatmul.f32.gmra.mxu0 %v667
        %v959 = vpop.f32.mrf.mxu0
        %v960 = vadd.f32 %v847, %v959
        %961 = vmatmul.f32.gmra.mxu0 %v671
        %v962 = vpop.f32.mrf.mxu0
        %v963 = vadd.f32 %v850, %v962
        %964 = vmatmul.f32.gmra.mxu0 %v675
        %v965 = vpop.f32.mrf.mxu0
        %v966 = vadd.f32 %v853, %v965
        %967 = vdwg.mxu0
        %968 = vmatpush.msra.mxu0 %v725
        %969 = vmatpush.msra.mxu0 %v724
        %970 = vmatpush.msra.mxu0 %v723
        %971 = vmatpush.msra.mxu0 %v722
        %972 = vmatpush.msra.mxu0 %v721
        %973 = vmatpush.msra.mxu0 %v720
        %974 = vmatpush.msra.mxu0 %v719
        %975 = vmatpush.msra.mxu0 %v718
        %976 = vmatpush.msra.mxu0 %v717
        %977 = vmatpush.msra.mxu0 %v716
        %978 = vmatpush.msra.mxu0 %v715
        %979 = vmatpush.msra.mxu0 %v714
        %980 = vmatpush.msra.mxu0 %v713
        %981 = vmatpush.msra.mxu0 %v712
        %982 = vmatpush.msra.mxu0 %v711
        %983 = vmatpush.msra.mxu0 %v710
        %984 = vmatmul.f32.gmra.mxu0 %v552
        %v985 = vpop.f32.mrf.mxu0
        %v986 = vadd.f32 %v873, %v985
        %987 = vmatmul.f32.gmra.mxu0 %v556
        %v988 = vpop.f32.mrf.mxu0
        %v989 = vadd.f32 %v876, %v988
        %990 = vmatmul.f32.gmra.mxu0 %v560
        %v991 = vpop.f32.mrf.mxu0
        %v992 = vadd.f32 %v879, %v991
        %993 = vmatmul.f32.gmra.mxu0 %v564
        %v994 = vpop.f32.mrf.mxu0
        %v995 = vadd.f32 %v882, %v994
        %996 = vmatmul.f32.gmra.mxu0 %v568
        %v997 = vpop.f32.mrf.mxu0
        %v998 = vadd.f32 %v885, %v997
        %999 = vmatmul.f32.gmra.mxu0 %v572
        %v1000 = vpop.f32.mrf.mxu0
        %v1001 = vadd.f32 %v888, %v1000
        %1002 = vmatmul.f32.gmra.mxu0 %v576
        %v1003 = vpop.f32.mrf.mxu0
        %v1004 = vadd.f32 %v891, %v1003
        %1005 = vmatmul.f32.gmra.mxu0 %v580
        %v1006 = vpop.f32.mrf.mxu0
        %v1007 = vadd.f32 %v894, %v1006
        %1008 = vmatmul.f32.gmra.mxu0 %v584
        %v1009 = vpop.f32.mrf.mxu0
        %v1010 = vadd.f32 %v897, %v1009
        %1011 = vmatmul.f32.gmra.mxu0 %v588
        %v1012 = vpop.f32.mrf.mxu0
        %v1013 = vadd.f32 %v900, %v1012
        %1014 = vmatmul.f32.gmra.mxu0 %v592
        %v1015 = vpop.f32.mrf.mxu0
        %v1016 = vadd.f32 %v903, %v1015
        %1017 = vmatmul.f32.gmra.mxu0 %v596
        %v1018 = vpop.f32.mrf.mxu0
        %v1019 = vadd.f32 %v906, %v1018
        %1020 = vmatmul.f32.gmra.mxu0 %v600
        %v1021 = vpop.f32.mrf.mxu0
        %v1022 = vadd.f32 %v909, %v1021
        %1023 = vmatmul.f32.gmra.mxu0 %v604
        %v1024 = vpop.f32.mrf.mxu0
        %v1025 = vadd.f32 %v912, %v1024
        %1026 = vmatmul.f32.gmra.mxu0 %v608
        %v1027 = vpop.f32.mrf.mxu0
        %v1028 = vadd.f32 %v915, %v1027
        %1029 = vmatmul.f32.gmra.mxu0 %v612
        %v1030 = vpop.f32.mrf.mxu0
        %v1031 = vadd.f32 %v918, %v1030
        %1032 = vmatmul.f32.gmra.mxu0 %v616
        %v1033 = vpop.f32.mrf.mxu0
        %v1034 = vadd.f32 %v921, %v1033
        %1035 = vmatmul.f32.gmra.mxu0 %v620
        %v1036 = vpop.f32.mrf.mxu0
        %v1037 = vadd.f32 %v924, %v1036
        %1038 = vmatmul.f32.gmra.mxu0 %v624
        %v1039 = vpop.f32.mrf.mxu0
        %v1040 = vadd.f32 %v927, %v1039
        %1041 = vmatmul.f32.gmra.mxu0 %v628
        %v1042 = vpop.f32.mrf.mxu0
        %v1043 = vadd.f32 %v930, %v1042
        %1044 = vmatmul.f32.gmra.mxu0 %v632
        %v1045 = vpop.f32.mrf.mxu0
        %v1046 = vadd.f32 %v933, %v1045
        %1047 = vmatmul.f32.gmra.mxu0 %v636
        %v1048 = vpop.f32.mrf.mxu0
        %v1049 = vadd.f32 %v936, %v1048
        %1050 = vmatmul.f32.gmra.mxu0 %v640
        %v1051 = vpop.f32.mrf.mxu0
        %v1052 = vadd.f32 %v939, %v1051
        %1053 = vmatmul.f32.gmra.mxu0 %v644
        %v1054 = vpop.f32.mrf.mxu0
        %v1055 = vadd.f32 %v942, %v1054
        %1056 = vmatmul.f32.gmra.mxu0 %v648
        %v1057 = vpop.f32.mrf.mxu0
        %v1058 = vadd.f32 %v945, %v1057
        %1059 = vmatmul.f32.gmra.mxu0 %v652
        %v1060 = vpop.f32.mrf.mxu0
        %v1061 = vadd.f32 %v948, %v1060
        %1062 = vmatmul.f32.gmra.mxu0 %v656
        %v1063 = vpop.f32.mrf.mxu0
        %v1064 = vadd.f32 %v951, %v1063
        %1065 = vmatmul.f32.gmra.mxu0 %v660
        %v1066 = vpop.f32.mrf.mxu0
        %v1067 = vadd.f32 %v954, %v1066
        %1068 = vmatmul.f32.gmra.mxu0 %v664
        %v1069 = vpop.f32.mrf.mxu0
        %v1070 = vadd.f32 %v957, %v1069
        %1071 = vmatmul.f32.gmra.mxu0 %v668
        %v1072 = vpop.f32.mrf.mxu0
        %v1073 = vadd.f32 %v960, %v1072
        %1074 = vmatmul.f32.gmra.mxu0 %v672
        %v1075 = vpop.f32.mrf.mxu0
        %v1076 = vadd.f32 %v963, %v1075
        %1077 = vmatmul.f32.gmra.mxu0 %v676
        %v1078 = vpop.f32.mrf.mxu0
        %v1079 = vadd.f32 %v966, %v1078
        %1080 = vdwg.mxu0
        %1081 = vmatpush.msra.mxu0 %v741
        %1082 = vmatpush.msra.mxu0 %v740
        %1083 = vmatpush.msra.mxu0 %v739
        %1084 = vmatpush.msra.mxu0 %v738
        %1085 = vmatpush.msra.mxu0 %v737
        %1086 = vmatpush.msra.mxu0 %v736
        %1087 = vmatpush.msra.mxu0 %v735
        %1088 = vmatpush.msra.mxu0 %v734
        %1089 = vmatpush.msra.mxu0 %v733
        %1090 = vmatpush.msra.mxu0 %v732
        %1091 = vmatpush.msra.mxu0 %v731
        %1092 = vmatpush.msra.mxu0 %v730
        %1093 = vmatpush.msra.mxu0 %v729
        %1094 = vmatpush.msra.mxu0 %v728
        %1095 = vmatpush.msra.mxu0 %v727
        %1096 = vmatpush.msra.mxu0 %v726
        %1097 = vmatmul.f32.gmra.mxu0 %v553
        %v1098 = vpop.f32.mrf.mxu0
        %v1099 = vadd.f32 %v986, %v1098
        %1100 = vmatmul.f32.gmra.mxu0 %v557
        %v1101 = vpop.f32.mrf.mxu0
        %v1102 = vadd.f32 %v989, %v1101
        %1103 = vmatmul.f32.gmra.mxu0 %v561
        %v1104 = vpop.f32.mrf.mxu0
        %v1105 = vadd.f32 %v992, %v1104
        %1106 = vmatmul.f32.gmra.mxu0 %v565
        %v1107 = vpop.f32.mrf.mxu0
        %v1108 = vadd.f32 %v995, %v1107
        %1109 = vmatmul.f32.gmra.mxu0 %v569
        %v1110 = vpop.f32.mrf.mxu0
        %v1111 = vadd.f32 %v998, %v1110
        %1112 = vmatmul.f32.gmra.mxu0 %v573
        %v1113 = vpop.f32.mrf.mxu0
        %v1114 = vadd.f32 %v1001, %v1113
        %1115 = vmatmul.f32.gmra.mxu0 %v577
        %v1116 = vpop.f32.mrf.mxu0
        %v1117 = vadd.f32 %v1004, %v1116
        %1118 = vmatmul.f32.gmra.mxu0 %v581
        %v1119 = vpop.f32.mrf.mxu0
        %v1120 = vadd.f32 %v1007, %v1119
        %1121 = vmatmul.f32.gmra.mxu0 %v585
        %v1122 = vpop.f32.mrf.mxu0
        %v1123 = vadd.f32 %v1010, %v1122
        %1124 = vmatmul.f32.gmra.mxu0 %v589
        %v1125 = vpop.f32.mrf.mxu0
        %v1126 = vadd.f32 %v1013, %v1125
        %1127 = vmatmul.f32.gmra.mxu0 %v593
        %v1128 = vpop.f32.mrf.mxu0
        %v1129 = vadd.f32 %v1016, %v1128
        %1130 = vmatmul.f32.gmra.mxu0 %v597
        %v1131 = vpop.f32.mrf.mxu0
        %v1132 = vadd.f32 %v1019, %v1131
        %1133 = vmatmul.f32.gmra.mxu0 %v601
        %v1134 = vpop.f32.mrf.mxu0
        %v1135 = vadd.f32 %v1022, %v1134
        %1136 = vmatmul.f32.gmra.mxu0 %v605
        %v1137 = vpop.f32.mrf.mxu0
        %v1138 = vadd.f32 %v1025, %v1137
        %1139 = vmatmul.f32.gmra.mxu0 %v609
        %v1140 = vpop.f32.mrf.mxu0
        %v1141 = vadd.f32 %v1028, %v1140
        %1142 = vmatmul.f32.gmra.mxu0 %v613
        %v1143 = vpop.f32.mrf.mxu0
        %v1144 = vadd.f32 %v1031, %v1143
        %1145 = vmatmul.f32.gmra.mxu0 %v617
        %v1146 = vpop.f32.mrf.mxu0
        %v1147 = vadd.f32 %v1034, %v1146
        %1148 = vmatmul.f32.gmra.mxu0 %v621
        %v1149 = vpop.f32.mrf.mxu0
        %v1150 = vadd.f32 %v1037, %v1149
        %1151 = vmatmul.f32.gmra.mxu0 %v625
        %v1152 = vpop.f32.mrf.mxu0
        %v1153 = vadd.f32 %v1040, %v1152
        %1154 = vmatmul.f32.gmra.mxu0 %v629
        %v1155 = vpop.f32.mrf.mxu0
        %v1156 = vadd.f32 %v1043, %v1155
        %1157 = vmatmul.f32.gmra.mxu0 %v633
        %v1158 = vpop.f32.mrf.mxu0
        %v1159 = vadd.f32 %v1046, %v1158
        %1160 = vmatmul.f32.gmra.mxu0 %v637
        %v1161 = vpop.f32.mrf.mxu0
        %v1162 = vadd.f32 %v1049, %v1161
        %1163 = vmatmul.f32.gmra.mxu0 %v641
        %v1164 = vpop.f32.mrf.mxu0
        %v1165 = vadd.f32 %v1052, %v1164
        %1166 = vmatmul.f32.gmra.mxu0 %v645
        %v1167 = vpop.f32.mrf.mxu0
        %v1168 = vadd.f32 %v1055, %v1167
        %1169 = vmatmul.f32.gmra.mxu0 %v649
        %v1170 = vpop.f32.mrf.mxu0
        %v1171 = vadd.f32 %v1058, %v1170
        %1172 = vmatmul.f32.gmra.mxu0 %v653
        %v1173 = vpop.f32.mrf.mxu0
        %v1174 = vadd.f32 %v1061, %v1173
        %1175 = vmatmul.f32.gmra.mxu0 %v657
        %v1176 = vpop.f32.mrf.mxu0
        %v1177 = vadd.f32 %v1064, %v1176
        %1178 = vmatmul.f32.gmra.mxu0 %v661
        %v1179 = vpop.f32.mrf.mxu0
        %v1180 = vadd.f32 %v1067, %v1179
        %1181 = vmatmul.f32.gmra.mxu0 %v665
        %v1182 = vpop.f32.mrf.mxu0
        %v1183 = vadd.f32 %v1070, %v1182
        %1184 = vmatmul.f32.gmra.mxu0 %v669
        %v1185 = vpop.f32.mrf.mxu0
        %v1186 = vadd.f32 %v1073, %v1185
        %1187 = vmatmul.f32.gmra.mxu0 %v673
        %v1188 = vpop.f32.mrf.mxu0
        %v1189 = vadd.f32 %v1076, %v1188
        %1190 = vmatmul.f32.gmra.mxu0 %v677
        %v1191 = vpop.f32.mrf.mxu0
        %v1192 = vadd.f32 %v1079, %v1191
        %1193 = vdwg.mxu0
        %v1194 = vadd.f32 %v518, %v1099
        %v1195 = vadd.f32 %v519, %v1102
        %v1196 = vadd.f32 %v520, %v1105
        %v1197 = vadd.f32 %v521, %v1108
        %v1198 = vadd.f32 %v522, %v1111
        %v1199 = vadd.f32 %v523, %v1114
        %v1200 = vadd.f32 %v524, %v1117
        %v1201 = vadd.f32 %v525, %v1120
        %v1202 = vadd.f32 %v526, %v1123
        %v1203 = vadd.f32 %v527, %v1126
        %v1204 = vadd.f32 %v528, %v1129
        %v1205 = vadd.f32 %v529, %v1132
        %v1206 = vadd.f32 %v530, %v1135
        %v1207 = vadd.f32 %v531, %v1138
        %v1208 = vadd.f32 %v532, %v1141
        %v1209 = vadd.f32 %v533, %v1144
        %v1210 = vadd.f32 %v534, %v1147
        %v1211 = vadd.f32 %v535, %v1150
        %v1212 = vadd.f32 %v536, %v1153
        %v1213 = vadd.f32 %v537, %v1156
        %v1214 = vadd.f32 %v538, %v1159
        %v1215 = vadd.f32 %v539, %v1162
        %v1216 = vadd.f32 %v540, %v1165
        %v1217 = vadd.f32 %v541, %v1168
        %v1218 = vadd.f32 %v542, %v1171
        %v1219 = vadd.f32 %v543, %v1174
        %v1220 = vadd.f32 %v544, %v1177
        %v1221 = vadd.f32 %v545, %v1180
        %v1222 = vadd.f32 %v546, %v1183
        %v1223 = vadd.f32 %v547, %v1186
        %v1224 = vadd.f32 %v548, %v1189
        %v1225 = vadd.f32 %v549, %v1192
        %1226 = vst [vmem:[#allocation2] sm:$0xff] %v1194
        %1227 = vst [vmem:[#allocation2 + $0x8] sm:$0xff] %v1195
        %1228 = vst [vmem:[#allocation2 + $0x10] sm:$0xff] %v1196
        %1229 = vst [vmem:[#allocation2 + $0x18] sm:$0xff] %v1197
        %1230 = vst [vmem:[#allocation2 + $0x20] sm:$0xff] %v1198
        %1231 = vst [vmem:[#allocation2 + $0x28] sm:$0xff] %v1199
        %1232 = vst [vmem:[#allocation2 + $0x30] sm:$0xff] %v1200
        %1233 = vst [vmem:[#allocation2 + $0x38] sm:$0xff] %v1201
        %1234 = vst [vmem:[#allocation2 + $0x40] sm:$0xff] %v1202
        %1235 = vst [vmem:[#allocation2 + $0x48] sm:$0xff] %v1203
        %1236 = vst [vmem:[#allocation2 + $0x50] sm:$0xff] %v1204
        %1237 = vst [vmem:[#allocation2 + $0x58] sm:$0xff] %v1205
        %1238 = vst [vmem:[#allocation2 + $0x60] sm:$0xff] %v1206
        %1239 = vst [vmem:[#allocation2 + $0x68] sm:$0xff] %v1207
        %1240 = vst [vmem:[#allocation2 + $0x70] sm:$0xff] %v1208
        %1241 = vst [vmem:[#allocation2 + $0x78] sm:$0xff] %v1209
        %1242 = vst [vmem:[#allocation2 + $0x80] sm:$0xff] %v1210
        %1243 = vst [vmem:[#allocation2 + $0x88] sm:$0xff] %v1211
        %1244 = vst [vmem:[#allocation2 + $0x90] sm:$0xff] %v1212
        %1245 = vst [vmem:[#allocation2 + $0x98] sm:$0xff] %v1213
        %1246 = vst [vmem:[#allocation2 + $0xa0] sm:$0xff] %v1214
        %1247 = vst [vmem:[#allocation2 + $0xa8] sm:$0xff] %v1215
        %1248 = vst [vmem:[#allocation2 + $0xb0] sm:$0xff] %v1216
        %1249 = vst [vmem:[#allocation2 + $0xb8] sm:$0xff] %v1217
        %1250 = vst [vmem:[#allocation2 + $0xc0] sm:$0xff] %v1218
        %1251 = vst [vmem:[#allocation2 + $0xc8] sm:$0xff] %v1219
        %1252 = vst [vmem:[#allocation2 + $0xd0] sm:$0xff] %v1220
        %1253 = vst [vmem:[#allocation2 + $0xd8] sm:$0xff] %v1221
        %1254 = vst [vmem:[#allocation2 + $0xe0] sm:$0xff] %v1222
        %1255 = vst [vmem:[#allocation2 + $0xe8] sm:$0xff] %v1223
        %1256 = vst [vmem:[#allocation2 + $0xf0] sm:$0xff] %v1224
        %1257 = vst [vmem:[#allocation2 + $0xf8] sm:$0xff] %v1225
        %p1258 = scmp.eq.s32.totalorder %s36, 1
        // Predicated region
        $region89: #{tpu_custom_call.1} parent=51 // pred_check
          %p1259 = pneg %p1258
        $region90: #{tpu_custom_call.1} parent=51 // pred_check_branch
          %1261 = sbr.rel (%p1259) target = $region92
        $region91: #{tpu_custom_call.1} parent=51 // pred_region
          %v1262 = vld [vmem:[#allocation2] sm:$0xff]
          %v1263 = vld [vmem:[#allocation2 + $0x8] sm:$0xff]
          %v1264 = vld [vmem:[#allocation2 + $0x10] sm:$0xff]
          %v1265 = vld [vmem:[#allocation2 + $0x18] sm:$0xff]
          %v1266 = vld [vmem:[#allocation2 + $0x20] sm:$0xff]
          %v1267 = vld [vmem:[#allocation2 + $0x28] sm:$0xff]
          %v1268 = vld [vmem:[#allocation2 + $0x30] sm:$0xff]
          %v1269 = vld [vmem:[#allocation2 + $0x38] sm:$0xff]
          %v1270 = vld [vmem:[#allocation2 + $0x40] sm:$0xff]
          %v1271 = vld [vmem:[#allocation2 + $0x48] sm:$0xff]
          %v1272 = vld [vmem:[#allocation2 + $0x50] sm:$0xff]
          %v1273 = vld [vmem:[#allocation2 + $0x58] sm:$0xff]
          %v1274 = vld [vmem:[#allocation2 + $0x60] sm:$0xff]
          %v1275 = vld [vmem:[#allocation2 + $0x68] sm:$0xff]
          %v1276 = vld [vmem:[#allocation2 + $0x70] sm:$0xff]
          %v1277 = vld [vmem:[#allocation2 + $0x78] sm:$0xff]
          %v1278 = vld [vmem:[#allocation2 + $0x80] sm:$0xff]
          %v1279 = vld [vmem:[#allocation2 + $0x88] sm:$0xff]
          %v1280 = vld [vmem:[#allocation2 + $0x90] sm:$0xff]
          %v1281 = vld [vmem:[#allocation2 + $0x98] sm:$0xff]
          %v1282 = vld [vmem:[#allocation2 + $0xa0] sm:$0xff]
          %v1283 = vld [vmem:[#allocation2 + $0xa8] sm:$0xff]
          %v1284 = vld [vmem:[#allocation2 + $0xb0] sm:$0xff]
          %v1285 = vld [vmem:[#allocation2 + $0xb8] sm:$0xff]
          %v1286 = vld [vmem:[#allocation2 + $0xc0] sm:$0xff]
          %v1287 = vld [vmem:[#allocation2 + $0xc8] sm:$0xff]
          %v1288 = vld [vmem:[#allocation2 + $0xd0] sm:$0xff]
          %v1289 = vld [vmem:[#allocation2 + $0xd8] sm:$0xff]
          %v1290 = vld [vmem:[#allocation2 + $0xe0] sm:$0xff]
          %v1291 = vld [vmem:[#allocation2 + $0xe8] sm:$0xff]
          %v1292 = vld [vmem:[#allocation2 + $0xf0] sm:$0xff]
          %v1293 = vld [vmem:[#allocation2 + $0xf8] sm:$0xff]
          %v1294 = vld [vmem:[#allocation8] sm:$0xff]
          %v1295 = vld [vmem:[#allocation8 + $0x8] sm:$0xff]
          %v1296 = vld [vmem:[#allocation8 + $0x10] sm:$0xff]
          %v1297 = vld [vmem:[#allocation8 + $0x18] sm:$0xff]
          %v1298 = vld [vmem:[#allocation8 + $0x20] sm:$0xff]
          %v1299 = vld [vmem:[#allocation8 + $0x28] sm:$0xff]
          %v1300 = vld [vmem:[#allocation8 + $0x30] sm:$0xff]
          %v1301 = vld [vmem:[#allocation8 + $0x38] sm:$0xff]
          %v1302 = vld [vmem:[#allocation8 + $0x40] sm:$0xff]
          %v1303 = vld [vmem:[#allocation8 + $0x48] sm:$0xff]
          %v1304 = vld [vmem:[#allocation8 + $0x50] sm:$0xff]
          %v1305 = vld [vmem:[#allocation8 + $0x58] sm:$0xff]
          %v1306 = vld [vmem:[#allocation8 + $0x60] sm:$0xff]
          %v1307 = vld [vmem:[#allocation8 + $0x68] sm:$0xff]
          %v1308 = vld [vmem:[#allocation8 + $0x70] sm:$0xff]
          %v1309 = vld [vmem:[#allocation8 + $0x78] sm:$0xff]
          %v1310 = vld [vmem:[#allocation9] sm:$0x1]
          %v1312 = vperm.slane %v1310, 0
          %1314 = vmatpush.msra.mxu0 %v1309
          %1315 = vmatpush.msra.mxu0 %v1308
          %1316 = vmatpush.msra.mxu0 %v1307
          %1317 = vmatpush.msra.mxu0 %v1306
          %1318 = vmatpush.msra.mxu0 %v1305
          %1319 = vmatpush.msra.mxu0 %v1304
          %1320 = vmatpush.msra.mxu0 %v1303
          %1321 = vmatpush.msra.mxu0 %v1302
          %1322 = vmatpush.msra.mxu0 %v1301
          %1323 = vmatpush.msra.mxu0 %v1300
          %1324 = vmatpush.msra.mxu0 %v1299
          %1325 = vmatpush.msra.mxu0 %v1298
          %1326 = vmatpush.msra.mxu0 %v1297
          %1327 = vmatpush.msra.mxu0 %v1296
          %1328 = vmatpush.msra.mxu0 %v1295
          %1329 = vmatpush.msra.mxu0 %v1294
          %1330 = vmatmul.f32.gmra.mxu0 %v1262
          %v1331 = vpop.f32.mrf.mxu0
          %v1332 = vadd.f32 %v1312, %v1331
          %1333 = vmatmul.f32.gmra.mxu0 %v1263
          %v1334 = vpop.f32.mrf.mxu0
          %v1335 = vadd.f32 %v1312, %v1334
          %1336 = vmatmul.f32.gmra.mxu0 %v1264
          %v1337 = vpop.f32.mrf.mxu0
          %v1338 = vadd.f32 %v1312, %v1337
          %1339 = vmatmul.f32.gmra.mxu0 %v1265
          %v1340 = vpop.f32.mrf.mxu0
          %v1341 = vadd.f32 %v1312, %v1340
          %1342 = vmatmul.f32.gmra.mxu0 %v1266
          %v1343 = vpop.f32.mrf.mxu0
          %v1344 = vadd.f32 %v1312, %v1343
          %1345 = vmatmul.f32.gmra.mxu0 %v1267
          %v1346 = vpop.f32.mrf.mxu0
          %v1347 = vadd.f32 %v1312, %v1346
          %1348 = vmatmul.f32.gmra.mxu0 %v1268
          %v1349 = vpop.f32.mrf.mxu0
          %v1350 = vadd.f32 %v1312, %v1349
          %1351 = vmatmul.f32.gmra.mxu0 %v1269
          %v1352 = vpop.f32.mrf.mxu0
          %v1353 = vadd.f32 %v1312, %v1352
          %1354 = vmatmul.f32.gmra.mxu0 %v1270
          %v1355 = vpop.f32.mrf.mxu0
          %v1356 = vadd.f32 %v1312, %v1355
          %1357 = vmatmul.f32.gmra.mxu0 %v1271
          %v1358 = vpop.f32.mrf.mxu0
          %v1359 = vadd.f32 %v1312, %v1358
          %1360 = vmatmul.f32.gmra.mxu0 %v1272
          %v1361 = vpop.f32.mrf.mxu0
          %v1362 = vadd.f32 %v1312, %v1361
          %1363 = vmatmul.f32.gmra.mxu0 %v1273
          %v1364 = vpop.f32.mrf.mxu0
          %v1365 = vadd.f32 %v1312, %v1364
          %1366 = vmatmul.f32.gmra.mxu0 %v1274
          %v1367 = vpop.f32.mrf.mxu0
          %v1368 = vadd.f32 %v1312, %v1367
          %1369 = vmatmul.f32.gmra.mxu0 %v1275
          %v1370 = vpop.f32.mrf.mxu0
          %v1371 = vadd.f32 %v1312, %v1370
          %1372 = vmatmul.f32.gmra.mxu0 %v1276
          %v1373 = vpop.f32.mrf.mxu0
          %v1374 = vadd.f32 %v1312, %v1373
          %1375 = vmatmul.f32.gmra.mxu0 %v1277
          %v1376 = vpop.f32.mrf.mxu0
          %v1377 = vadd.f32 %v1312, %v1376
          %1378 = vmatmul.f32.gmra.mxu0 %v1278
          %v1379 = vpop.f32.mrf.mxu0
          %v1380 = vadd.f32 %v1312, %v1379
          %1381 = vmatmul.f32.gmra.mxu0 %v1279
          %v1382 = vpop.f32.mrf.mxu0
          %v1383 = vadd.f32 %v1312, %v1382
          %1384 = vmatmul.f32.gmra.mxu0 %v1280
          %v1385 = vpop.f32.mrf.mxu0
          %v1386 = vadd.f32 %v1312, %v1385
          %1387 = vmatmul.f32.gmra.mxu0 %v1281
          %v1388 = vpop.f32.mrf.mxu0
          %v1389 = vadd.f32 %v1312, %v1388
          %1390 = vmatmul.f32.gmra.mxu0 %v1282
          %v1391 = vpop.f32.mrf.mxu0
          %v1392 = vadd.f32 %v1312, %v1391
          %1393 = vmatmul.f32.gmra.mxu0 %v1283
          %v1394 = vpop.f32.mrf.mxu0
          %v1395 = vadd.f32 %v1312, %v1394
          %1396 = vmatmul.f32.gmra.mxu0 %v1284
          %v1397 = vpop.f32.mrf.mxu0
          %v1398 = vadd.f32 %v1312, %v1397
          %1399 = vmatmul.f32.gmra.mxu0 %v1285
          %v1400 = vpop.f32.mrf.mxu0
          %v1401 = vadd.f32 %v1312, %v1400
          %1402 = vmatmul.f32.gmra.mxu0 %v1286
          %v1403 = vpop.f32.mrf.mxu0
          %v1404 = vadd.f32 %v1312, %v1403
          %1405 = vmatmul.f32.gmra.mxu0 %v1287
          %v1406 = vpop.f32.mrf.mxu0
          %v1407 = vadd.f32 %v1312, %v1406
          %1408 = vmatmul.f32.gmra.mxu0 %v1288
          %v1409 = vpop.f32.mrf.mxu0
          %v1410 = vadd.f32 %v1312, %v1409
          %1411 = vmatmul.f32.gmra.mxu0 %v1289
          %v1412 = vpop.f32.mrf.mxu0
          %v1413 = vadd.f32 %v1312, %v1412
          %1414 = vmatmul.f32.gmra.mxu0 %v1290
          %v1415 = vpop.f32.mrf.mxu0
          %v1416 = vadd.f32 %v1312, %v1415
          %1417 = vmatmul.f32.gmra.mxu0 %v1291
          %v1418 = vpop.f32.mrf.mxu0
          %v1419 = vadd.f32 %v1312, %v1418
          %1420 = vmatmul.f32.gmra.mxu0 %v1292
          %v1421 = vpop.f32.mrf.mxu0
          %v1422 = vadd.f32 %v1312, %v1421
          %1423 = vmatmul.f32.gmra.mxu0 %v1293
          %v1424 = vpop.f32.mrf.mxu0
          %v1425 = vadd.f32 %v1312, %v1424
          %1426 = vdwg.mxu0
          %v1427 = vmax.f32 %v1332, 0.0
          %v1428 = vmax.f32 %v1335, 0.0
          %v1429 = vmax.f32 %v1338, 0.0
          %v1430 = vmax.f32 %v1341, 0.0
          %v1431 = vmax.f32 %v1344, 0.0
          %v1432 = vmax.f32 %v1347, 0.0
          %v1433 = vmax.f32 %v1350, 0.0
          %v1434 = vmax.f32 %v1353, 0.0
          %v1435 = vmax.f32 %v1356, 0.0
          %v1436 = vmax.f32 %v1359, 0.0
          %v1437 = vmax.f32 %v1362, 0.0
          %v1438 = vmax.f32 %v1365, 0.0
          %v1439 = vmax.f32 %v1368, 0.0
          %v1440 = vmax.f32 %v1371, 0.0
          %v1441 = vmax.f32 %v1374, 0.0
          %v1442 = vmax.f32 %v1377, 0.0
          %v1443 = vmax.f32 %v1380, 0.0
          %v1444 = vmax.f32 %v1383, 0.0
          %v1445 = vmax.f32 %v1386, 0.0
          %v1446 = vmax.f32 %v1389, 0.0
          %v1447 = vmax.f32 %v1392, 0.0
          %v1448 = vmax.f32 %v1395, 0.0
          %v1449 = vmax.f32 %v1398, 0.0
          %v1450 = vmax.f32 %v1401, 0.0
          %v1451 = vmax.f32 %v1404, 0.0
          %v1452 = vmax.f32 %v1407, 0.0
          %v1453 = vmax.f32 %v1410, 0.0
          %v1454 = vmax.f32 %v1413, 0.0
          %v1455 = vmax.f32 %v1416, 0.0
          %v1456 = vmax.f32 %v1419, 0.0
          %v1457 = vmax.f32 %v1422, 0.0
          %v1458 = vmax.f32 %v1425, 0.0
          %v1459 = vld [vmem:[#allocation11] sm:$0xff]
          %v1460 = vld [vmem:[#allocation11 + $0x8] sm:$0xff]
          %v1461 = vld [vmem:[#allocation11 + $0x10] sm:$0xff]
          %v1462 = vld [vmem:[#allocation11 + $0x18] sm:$0xff]
          %v1463 = vld [vmem:[#allocation11 + $0x20] sm:$0xff]
          %v1464 = vld [vmem:[#allocation11 + $0x28] sm:$0xff]
          %v1465 = vld [vmem:[#allocation11 + $0x30] sm:$0xff]
          %v1466 = vld [vmem:[#allocation11 + $0x38] sm:$0xff]
          %v1467 = vld [vmem:[#allocation11 + $0x40] sm:$0xff]
          %v1468 = vld [vmem:[#allocation11 + $0x48] sm:$0xff]
          %v1469 = vld [vmem:[#allocation11 + $0x50] sm:$0xff]
          %v1470 = vld [vmem:[#allocation11 + $0x58] sm:$0xff]
          %v1471 = vld [vmem:[#allocation11 + $0x60] sm:$0xff]
          %v1472 = vld [vmem:[#allocation11 + $0x68] sm:$0xff]
          %v1473 = vld [vmem:[#allocation11 + $0x70] sm:$0xff]
          %v1474 = vld [vmem:[#allocation11 + $0x78] sm:$0xff]
          %v1475 = vld [vmem:[#allocation12] sm:$0x1]
          %v1477 = vperm.slane %v1475, 0
          %1479 = vmatpush.msra.mxu0 %v1474
          %1480 = vmatpush.msra.mxu0 %v1473
          %1481 = vmatpush.msra.mxu0 %v1472
          %1482 = vmatpush.msra.mxu0 %v1471
          %1483 = vmatpush.msra.mxu0 %v1470
          %1484 = vmatpush.msra.mxu0 %v1469
          %1485 = vmatpush.msra.mxu0 %v1468
          %1486 = vmatpush.msra.mxu0 %v1467
          %1487 = vmatpush.msra.mxu0 %v1466
          %1488 = vmatpush.msra.mxu0 %v1465
          %1489 = vmatpush.msra.mxu0 %v1464
          %1490 = vmatpush.msra.mxu0 %v1463
          %1491 = vmatpush.msra.mxu0 %v1462
          %1492 = vmatpush.msra.mxu0 %v1461
          %1493 = vmatpush.msra.mxu0 %v1460
          %1494 = vmatpush.msra.mxu0 %v1459
          %1495 = vmatmul.f32.gmra.mxu0 %v1427
          %v1496 = vpop.f32.mrf.mxu0
          %v1497 = vadd.f32 %v1477, %v1496
          %1498 = vmatmul.f32.gmra.mxu0 %v1428
          %v1499 = vpop.f32.mrf.mxu0
          %v1500 = vadd.f32 %v1477, %v1499
          %1501 = vmatmul.f32.gmra.mxu0 %v1429
          %v1502 = vpop.f32.mrf.mxu0
          %v1503 = vadd.f32 %v1477, %v1502
          %1504 = vmatmul.f32.gmra.mxu0 %v1430
          %v1505 = vpop.f32.mrf.mxu0
          %v1506 = vadd.f32 %v1477, %v1505
          %1507 = vmatmul.f32.gmra.mxu0 %v1431
          %v1508 = vpop.f32.mrf.mxu0
          %v1509 = vadd.f32 %v1477, %v1508
          %1510 = vmatmul.f32.gmra.mxu0 %v1432
          %v1511 = vpop.f32.mrf.mxu0
          %v1512 = vadd.f32 %v1477, %v1511
          %1513 = vmatmul.f32.gmra.mxu0 %v1433
          %v1514 = vpop.f32.mrf.mxu0
          %v1515 = vadd.f32 %v1477, %v1514
          %1516 = vmatmul.f32.gmra.mxu0 %v1434
          %v1517 = vpop.f32.mrf.mxu0
          %v1518 = vadd.f32 %v1477, %v1517
          %1519 = vmatmul.f32.gmra.mxu0 %v1435
          %v1520 = vpop.f32.mrf.mxu0
          %v1521 = vadd.f32 %v1477, %v1520
          %1522 = vmatmul.f32.gmra.mxu0 %v1436
          %v1523 = vpop.f32.mrf.mxu0
          %v1524 = vadd.f32 %v1477, %v1523
          %1525 = vmatmul.f32.gmra.mxu0 %v1437
          %v1526 = vpop.f32.mrf.mxu0
          %v1527 = vadd.f32 %v1477, %v1526
          %1528 = vmatmul.f32.gmra.mxu0 %v1438
          %v1529 = vpop.f32.mrf.mxu0
          %v1530 = vadd.f32 %v1477, %v1529
          %1531 = vmatmul.f32.gmra.mxu0 %v1439
          %v1532 = vpop.f32.mrf.mxu0
          %v1533 = vadd.f32 %v1477, %v1532
          %1534 = vmatmul.f32.gmra.mxu0 %v1440
          %v1535 = vpop.f32.mrf.mxu0
          %v1536 = vadd.f32 %v1477, %v1535
          %1537 = vmatmul.f32.gmra.mxu0 %v1441
          %v1538 = vpop.f32.mrf.mxu0
          %v1539 = vadd.f32 %v1477, %v1538
          %1540 = vmatmul.f32.gmra.mxu0 %v1442
          %v1541 = vpop.f32.mrf.mxu0
          %v1542 = vadd.f32 %v1477, %v1541
          %1543 = vmatmul.f32.gmra.mxu0 %v1443
          %v1544 = vpop.f32.mrf.mxu0
          %v1545 = vadd.f32 %v1477, %v1544
          %1546 = vmatmul.f32.gmra.mxu0 %v1444
          %v1547 = vpop.f32.mrf.mxu0
          %v1548 = vadd.f32 %v1477, %v1547
          %1549 = vmatmul.f32.gmra.mxu0 %v1445
          %v1550 = vpop.f32.mrf.mxu0
          %v1551 = vadd.f32 %v1477, %v1550
          %1552 = vmatmul.f32.gmra.mxu0 %v1446
          %v1553 = vpop.f32.mrf.mxu0
          %v1554 = vadd.f32 %v1477, %v1553
          %1555 = vmatmul.f32.gmra.mxu0 %v1447
          %v1556 = vpop.f32.mrf.mxu0
          %v1557 = vadd.f32 %v1477, %v1556
          %1558 = vmatmul.f32.gmra.mxu0 %v1448
          %v1559 = vpop.f32.mrf.mxu0
          %v1560 = vadd.f32 %v1477, %v1559
          %1561 = vmatmul.f32.gmra.mxu0 %v1449
          %v1562 = vpop.f32.mrf.mxu0
          %v1563 = vadd.f32 %v1477, %v1562
          %1564 = vmatmul.f32.gmra.mxu0 %v1450
          %v1565 = vpop.f32.mrf.mxu0
          %v1566 = vadd.f32 %v1477, %v1565
          %1567 = vmatmul.f32.gmra.mxu0 %v1451
          %v1568 = vpop.f32.mrf.mxu0
          %v1569 = vadd.f32 %v1477, %v1568
          %1570 = vmatmul.f32.gmra.mxu0 %v1452
          %v1571 = vpop.f32.mrf.mxu0
          %v1572 = vadd.f32 %v1477, %v1571
          %1573 = vmatmul.f32.gmra.mxu0 %v1453
          %v1574 = vpop.f32.mrf.mxu0
          %v1575 = vadd.f32 %v1477, %v1574
          %1576 = vmatmul.f32.gmra.mxu0 %v1454
          %v1577 = vpop.f32.mrf.mxu0
          %v1578 = vadd.f32 %v1477, %v1577
          %1579 = vmatmul.f32.gmra.mxu0 %v1455
          %v1580 = vpop.f32.mrf.mxu0
          %v1581 = vadd.f32 %v1477, %v1580
          %1582 = vmatmul.f32.gmra.mxu0 %v1456
          %v1583 = vpop.f32.mrf.mxu0
          %v1584 = vadd.f32 %v1477, %v1583
          %1585 = vmatmul.f32.gmra.mxu0 %v1457
          %v1586 = vpop.f32.mrf.mxu0
          %v1587 = vadd.f32 %v1477, %v1586
          %1588 = vmatmul.f32.gmra.mxu0 %v1458
          %v1589 = vpop.f32.mrf.mxu0
          %v1590 = vadd.f32 %v1477, %v1589
          %1591 = vdwg.mxu0
          %v1592 = vmax.f32 %v1497, 0.0
          %v1593 = vmax.f32 %v1500, 0.0
          %v1594 = vmax.f32 %v1503, 0.0
          %v1595 = vmax.f32 %v1506, 0.0
          %v1596 = vmax.f32 %v1509, 0.0
          %v1597 = vmax.f32 %v1512, 0.0
          %v1598 = vmax.f32 %v1515, 0.0
          %v1599 = vmax.f32 %v1518, 0.0
          %v1600 = vmax.f32 %v1521, 0.0
          %v1601 = vmax.f32 %v1524, 0.0
          %v1602 = vmax.f32 %v1527, 0.0
          %v1603 = vmax.f32 %v1530, 0.0
          %v1604 = vmax.f32 %v1533, 0.0
          %v1605 = vmax.f32 %v1536, 0.0
          %v1606 = vmax.f32 %v1539, 0.0
          %v1607 = vmax.f32 %v1542, 0.0
          %v1608 = vmax.f32 %v1545, 0.0
          %v1609 = vmax.f32 %v1548, 0.0
          %v1610 = vmax.f32 %v1551, 0.0
          %v1611 = vmax.f32 %v1554, 0.0
          %v1612 = vmax.f32 %v1557, 0.0
          %v1613 = vmax.f32 %v1560, 0.0
          %v1614 = vmax.f32 %v1563, 0.0
          %v1615 = vmax.f32 %v1566, 0.0
          %v1616 = vmax.f32 %v1569, 0.0
          %v1617 = vmax.f32 %v1572, 0.0
          %v1618 = vmax.f32 %v1575, 0.0
          %v1619 = vmax.f32 %v1578, 0.0
          %v1620 = vmax.f32 %v1581, 0.0
          %v1621 = vmax.f32 %v1584, 0.0
          %v1622 = vmax.f32 %v1587, 0.0
          %v1623 = vmax.f32 %v1590, 0.0
          %v1624 = vld [vmem:[#allocation14] sm:$0xff]
          %v1625 = vld [vmem:[#allocation14 + $0x8] sm:$0xff]
          %v1626 = vld [vmem:[#allocation14 + $0x10] sm:$0xff]
          %v1627 = vld [vmem:[#allocation14 + $0x18] sm:$0xff]
          %v1628 = vld [vmem:[#allocation14 + $0x20] sm:$0xff]
          %v1629 = vld [vmem:[#allocation14 + $0x28] sm:$0xff]
          %v1630 = vld [vmem:[#allocation14 + $0x30] sm:$0xff]
          %v1631 = vld [vmem:[#allocation14 + $0x38] sm:$0xff]
          %v1632 = vld [vmem:[#allocation14 + $0x40] sm:$0xff]
          %v1633 = vld [vmem:[#allocation14 + $0x48] sm:$0xff]
          %v1634 = vld [vmem:[#allocation14 + $0x50] sm:$0xff]
          %v1635 = vld [vmem:[#allocation14 + $0x58] sm:$0xff]
          %v1636 = vld [vmem:[#allocation14 + $0x60] sm:$0xff]
          %v1637 = vld [vmem:[#allocation14 + $0x68] sm:$0xff]
          %v1638 = vld [vmem:[#allocation14 + $0x70] sm:$0xff]
          %v1639 = vld [vmem:[#allocation14 + $0x78] sm:$0xff]
          %v1640 = vld [vmem:[#allocation15] sm:$0x1]
          %v1642 = vperm.slane %v1640, 0
          %1644 = vmatpush.msra.mxu0 %v1639
          %1645 = vmatpush.msra.mxu0 %v1638
          %1646 = vmatpush.msra.mxu0 %v1637
          %1647 = vmatpush.msra.mxu0 %v1636
          %1648 = vmatpush.msra.mxu0 %v1635
          %1649 = vmatpush.msra.mxu0 %v1634
          %1650 = vmatpush.msra.mxu0 %v1633
          %1651 = vmatpush.msra.mxu0 %v1632
          %1652 = vmatpush.msra.mxu0 %v1631
          %1653 = vmatpush.msra.mxu0 %v1630
          %1654 = vmatpush.msra.mxu0 %v1629
          %1655 = vmatpush.msra.mxu0 %v1628
          %1656 = vmatpush.msra.mxu0 %v1627
          %1657 = vmatpush.msra.mxu0 %v1626
          %1658 = vmatpush.msra.mxu0 %v1625
          %1659 = vmatpush.msra.mxu0 %v1624
          %1660 = vmatmul.f32.gmra.mxu0 %v1592
          %v1661 = vpop.f32.mrf.mxu0
          %v1662 = vadd.f32 %v1642, %v1661
          %1663 = vmatmul.f32.gmra.mxu0 %v1593
          %v1664 = vpop.f32.mrf.mxu0
          %v1665 = vadd.f32 %v1642, %v1664
          %1666 = vmatmul.f32.gmra.mxu0 %v1594
          %v1667 = vpop.f32.mrf.mxu0
          %v1668 = vadd.f32 %v1642, %v1667
          %1669 = vmatmul.f32.gmra.mxu0 %v1595
          %v1670 = vpop.f32.mrf.mxu0
          %v1671 = vadd.f32 %v1642, %v1670
          %1672 = vmatmul.f32.gmra.mxu0 %v1596
          %v1673 = vpop.f32.mrf.mxu0
          %v1674 = vadd.f32 %v1642, %v1673
          %1675 = vmatmul.f32.gmra.mxu0 %v1597
          %v1676 = vpop.f32.mrf.mxu0
          %v1677 = vadd.f32 %v1642, %v1676
          %1678 = vmatmul.f32.gmra.mxu0 %v1598
          %v1679 = vpop.f32.mrf.mxu0
          %v1680 = vadd.f32 %v1642, %v1679
          %1681 = vmatmul.f32.gmra.mxu0 %v1599
          %v1682 = vpop.f32.mrf.mxu0
          %v1683 = vadd.f32 %v1642, %v1682
          %1684 = vmatmul.f32.gmra.mxu0 %v1600
          %v1685 = vpop.f32.mrf.mxu0
          %v1686 = vadd.f32 %v1642, %v1685
          %1687 = vmatmul.f32.gmra.mxu0 %v1601
          %v1688 = vpop.f32.mrf.mxu0
          %v1689 = vadd.f32 %v1642, %v1688
          %1690 = vmatmul.f32.gmra.mxu0 %v1602
          %v1691 = vpop.f32.mrf.mxu0
          %v1692 = vadd.f32 %v1642, %v1691
          %1693 = vmatmul.f32.gmra.mxu0 %v1603
          %v1694 = vpop.f32.mrf.mxu0
          %v1695 = vadd.f32 %v1642, %v1694
          %1696 = vmatmul.f32.gmra.mxu0 %v1604
          %v1697 = vpop.f32.mrf.mxu0
          %v1698 = vadd.f32 %v1642, %v1697
          %1699 = vmatmul.f32.gmra.mxu0 %v1605
          %v1700 = vpop.f32.mrf.mxu0
          %v1701 = vadd.f32 %v1642, %v1700
          %1702 = vmatmul.f32.gmra.mxu0 %v1606
          %v1703 = vpop.f32.mrf.mxu0
          %v1704 = vadd.f32 %v1642, %v1703
          %1705 = vmatmul.f32.gmra.mxu0 %v1607
          %v1706 = vpop.f32.mrf.mxu0
          %v1707 = vadd.f32 %v1642, %v1706
          %1708 = vmatmul.f32.gmra.mxu0 %v1608
          %v1709 = vpop.f32.mrf.mxu0
          %v1710 = vadd.f32 %v1642, %v1709
          %1711 = vmatmul.f32.gmra.mxu0 %v1609
          %v1712 = vpop.f32.mrf.mxu0
          %v1713 = vadd.f32 %v1642, %v1712
          %1714 = vmatmul.f32.gmra.mxu0 %v1610
          %v1715 = vpop.f32.mrf.mxu0
          %v1716 = vadd.f32 %v1642, %v1715
          %1717 = vmatmul.f32.gmra.mxu0 %v1611
          %v1718 = vpop.f32.mrf.mxu0
          %v1719 = vadd.f32 %v1642, %v1718
          %1720 = vmatmul.f32.gmra.mxu0 %v1612
          %v1721 = vpop.f32.mrf.mxu0
          %v1722 = vadd.f32 %v1642, %v1721
          %1723 = vmatmul.f32.gmra.mxu0 %v1613
          %v1724 = vpop.f32.mrf.mxu0
          %v1725 = vadd.f32 %v1642, %v1724
          %1726 = vmatmul.f32.gmra.mxu0 %v1614
          %v1727 = vpop.f32.mrf.mxu0
          %v1728 = vadd.f32 %v1642, %v1727
          %1729 = vmatmul.f32.gmra.mxu0 %v1615
          %v1730 = vpop.f32.mrf.mxu0
          %v1731 = vadd.f32 %v1642, %v1730
          %1732 = vmatmul.f32.gmra.mxu0 %v1616
          %v1733 = vpop.f32.mrf.mxu0
          %v1734 = vadd.f32 %v1642, %v1733
          %1735 = vmatmul.f32.gmra.mxu0 %v1617
          %v1736 = vpop.f32.mrf.mxu0
          %v1737 = vadd.f32 %v1642, %v1736
          %1738 = vmatmul.f32.gmra.mxu0 %v1618
          %v1739 = vpop.f32.mrf.mxu0
          %v1740 = vadd.f32 %v1642, %v1739
          %1741 = vmatmul.f32.gmra.mxu0 %v1619
          %v1742 = vpop.f32.mrf.mxu0
          %v1743 = vadd.f32 %v1642, %v1742
          %1744 = vmatmul.f32.gmra.mxu0 %v1620
          %v1745 = vpop.f32.mrf.mxu0
          %v1746 = vadd.f32 %v1642, %v1745
          %1747 = vmatmul.f32.gmra.mxu0 %v1621
          %v1748 = vpop.f32.mrf.mxu0
          %v1749 = vadd.f32 %v1642, %v1748
          %1750 = vmatmul.f32.gmra.mxu0 %v1622
          %v1751 = vpop.f32.mrf.mxu0
          %v1752 = vadd.f32 %v1642, %v1751
          %1753 = vmatmul.f32.gmra.mxu0 %v1623
          %v1754 = vpop.f32.mrf.mxu0
          %v1755 = vadd.f32 %v1642, %v1754
          %1756 = vdwg.mxu0
          %v1757 = vmax.f32 %v1662, 0.0
          %v1758 = vmax.f32 %v1665, 0.0
          %v1759 = vmax.f32 %v1668, 0.0
          %v1760 = vmax.f32 %v1671, 0.0
          %v1761 = vmax.f32 %v1674, 0.0
          %v1762 = vmax.f32 %v1677, 0.0
          %v1763 = vmax.f32 %v1680, 0.0
          %v1764 = vmax.f32 %v1683, 0.0
          %v1765 = vmax.f32 %v1686, 0.0
          %v1766 = vmax.f32 %v1689, 0.0
          %v1767 = vmax.f32 %v1692, 0.0
          %v1768 = vmax.f32 %v1695, 0.0
          %v1769 = vmax.f32 %v1698, 0.0
          %v1770 = vmax.f32 %v1701, 0.0
          %v1771 = vmax.f32 %v1704, 0.0
          %v1772 = vmax.f32 %v1707, 0.0
          %v1773 = vmax.f32 %v1710, 0.0
          %v1774 = vmax.f32 %v1713, 0.0
          %v1775 = vmax.f32 %v1716, 0.0
          %v1776 = vmax.f32 %v1719, 0.0
          %v1777 = vmax.f32 %v1722, 0.0
          %v1778 = vmax.f32 %v1725, 0.0
          %v1779 = vmax.f32 %v1728, 0.0
          %v1780 = vmax.f32 %v1731, 0.0
          %v1781 = vmax.f32 %v1734, 0.0
          %v1782 = vmax.f32 %v1737, 0.0
          %v1783 = vmax.f32 %v1740, 0.0
          %v1784 = vmax.f32 %v1743, 0.0
          %v1785 = vmax.f32 %v1746, 0.0
          %v1786 = vmax.f32 %v1749, 0.0
          %v1787 = vmax.f32 %v1752, 0.0
          %v1788 = vmax.f32 %v1755, 0.0
          %1789 = vst [vmem:[%s477] sm:$0xff] %v1757
          %1790 = vst [vmem:[%s477 + $0x8] sm:$0xff] %v1758
          %1791 = vst [vmem:[%s477 + $0x10] sm:$0xff] %v1759
          %1792 = vst [vmem:[%s477 + $0x18] sm:$0xff] %v1760
          %1793 = vst [vmem:[%s477 + $0x20] sm:$0xff] %v1761
          %1794 = vst [vmem:[%s477 + $0x28] sm:$0xff] %v1762
          %1795 = vst [vmem:[%s477 + $0x30] sm:$0xff] %v1763
          %1796 = vst [vmem:[%s477 + $0x38] sm:$0xff] %v1764
          %1797 = vst [vmem:[%s477 + $0x40] sm:$0xff] %v1765
          %1798 = vst [vmem:[%s477 + $0x48] sm:$0xff] %v1766
          %1799 = vst [vmem:[%s477 + $0x50] sm:$0xff] %v1767
          %1800 = vst [vmem:[%s477 + $0x58] sm:$0xff] %v1768
          %1801 = vst [vmem:[%s477 + $0x60] sm:$0xff] %v1769
          %1802 = vst [vmem:[%s477 + $0x68] sm:$0xff] %v1770
          %1803 = vst [vmem:[%s477 + $0x70] sm:$0xff] %v1771
          %1804 = vst [vmem:[%s477 + $0x78] sm:$0xff] %v1772
          %1805 = vst [vmem:[%s477 + $0x80] sm:$0xff] %v1773
          %1806 = vst [vmem:[%s477 + $0x88] sm:$0xff] %v1774
          %1807 = vst [vmem:[%s477 + $0x90] sm:$0xff] %v1775
          %1808 = vst [vmem:[%s477 + $0x98] sm:$0xff] %v1776
          %1809 = vst [vmem:[%s477 + $0xa0] sm:$0xff] %v1777
          %1810 = vst [vmem:[%s477 + $0xa8] sm:$0xff] %v1778
          %1811 = vst [vmem:[%s477 + $0xb0] sm:$0xff] %v1779
          %1812 = vst [vmem:[%s477 + $0xb8] sm:$0xff] %v1780
          %1813 = vst [vmem:[%s477 + $0xc0] sm:$0xff] %v1781
          %1814 = vst [vmem:[%s477 + $0xc8] sm:$0xff] %v1782
          %1815 = vst [vmem:[%s477 + $0xd0] sm:$0xff] %v1783
          %1816 = vst [vmem:[%s477 + $0xd8] sm:$0xff] %v1784
          %1817 = vst [vmem:[%s477 + $0xe0] sm:$0xff] %v1785
          %1818 = vst [vmem:[%s477 + $0xe8] sm:$0xff] %v1786
          %1819 = vst [vmem:[%s477 + $0xf0] sm:$0xff] %v1787
          %1820 = vst [vmem:[%s477 + $0xf8] sm:$0xff] %v1788
        $region92: #{tpu_custom_call.1} parent=51 // pred_fallthru
          _
        %s1821 = sand.u32 %s231, 1
        %s1822 = scalar_lea.sflag [#allocation5], %s1821
        %s1823 = sand.u32 %s231, 1
        %s1824 = smul.addr %s1823, 256
        %s1825 = scalar_lea.vmem [#allocation17], %s1824
        // Predicated region
        $region93: #{tpu_custom_call.1} parent=51 // pred_check
          %p1826 = pneg %p241
        $region94: #{tpu_custom_call.1} parent=51 // pred_check_branch
          %1828 = sbr.rel (%p1826) target = $region96
        $region95: #{tpu_custom_call.1} parent=51 // pred_region
          %s1829 = smul.u32 32, %s35
          %1831 = vsyncadd %s1822, 0
          %s1832 = smul.addr %s1829, 8
          %s1833 = scalar_lea.hbm %s8, %s1832
          %s1834 = sshll.u32 %s1825, 4
          %s1835 = int_to_ptr.vmem [resolvable:$true] %s1834
          %s1836 = sshll.u32 %s1833, 4
          %s1837 = int_to_ptr.hbm [resolvable:$true] %s1836
          %1842 = dma.vmem_to_hbm [thread:$0]  %s1835, 4096, %s1837, %s1822, 128, 128, 8
        $region96: #{tpu_custom_call.1} parent=51 // pred_fallthru
          _
      $region52: #{tpu_custom_call.1} parent=5 // pred_fallthru
        _
      %p1843 = scmp.le.s32.totalorder 2, %s26
      // Predicated region
      $region97: #{tpu_custom_call.1} parent=5 // pred_check
        %p1844 = pneg %p1843
      $region98: #{tpu_custom_call.1} parent=5 // pred_check_branch
        %1846 = sbr.rel (%p1844) target = $region100
      $region99: #{tpu_custom_call.1} parent=5 // pred_region
        %s1847 = ssub.s32 %s26, 2
        // Predicated region
        $region101: #{tpu_custom_call.1} parent=99 // pred_check
          %p1848 = pneg %p247
        $region102: #{tpu_custom_call.1} parent=99 // pred_check_branch
          %1850 = sbr.rel (%p1848) target = $region104
        $region103: #{tpu_custom_call.1} parent=99 // pred_region
          %s1851 = sand.u32 %s232, 1
          %s1852 = scalar_lea.sflag [#allocation5], %s1851
          %s1853 = sand.u32 %s232, 1
          %s1854 = smul.addr %s1853, 256
          %s1855 = scalar_lea.vmem [#allocation17], %s1854
          %1857 = dma.done %s1852, 4096
        $region104: #{tpu_custom_call.1} parent=99 // pred_fallthru
          _
      $region100: #{tpu_custom_call.1} parent=5 // pred_fallthru
        _
    $region6: #{tpu_custom_call.1} parent=1 // loop_footer
      %s30 = sadd.s32 1, %s26
    $region7: #{tpu_custom_call.1} parent=1 // loop_footer_branch
      %25 = sbr.rel target = $region3
    $region8: #{tpu_custom_call.1} parent=1 // loop_exit
      _
    %1858 = vsyncpa [#allocation4], 1
    %s1859 = scalar_lea.sflag [#allocation4], 1
    %1860 = vsyncpa %s1859, 1
    %1861 = vsyncpa [#allocation7], 1
    %s1862 = scalar_lea.sflag [#allocation7], 1
    %1863 = vsyncpa %s1862, 1
    %1864 = vsyncpa [#allocation10], 1
    %1865 = vsyncpa [#allocation13], 1
    %1866 = vsyncpa [#allocation16], 1
    %1867 = vsyncpa [#allocation5], 1
    %s1868 = scalar_lea.sflag [#allocation5], 1
    %1869 = vsyncpa %s1868, 1

</llo_original>
